<compile_context>
chip_gen: v6e
topology: v6e:2x2x1
jax: 0.10.0
libtpu: 0.0.40
codegen_flags: <defaults>
</compile_context>

<pallas_src>
import numpy as np
import jax
import jax.numpy as jnp
from jax.experimental import pallas as pl
from jax.experimental.pallas import tpu as pltpu

# ----------------------------- model constants ------------------------------
NUM_JOINTS = 52          # 1 global + 21 body + 15 left hand + 15 right hand
NUM_BETAS = 16
NUM_VERTS = 128          # synthetic small mesh (real SMPL-H has 6890 vertices)
POSE_FEAT = (NUM_JOINTS - 1) * 9   # 459
NUM_COEFF = NUM_BETAS + POSE_FEAT  # 475

# standard SMPL-H kinematic tree
SMPLH_PARENTS = np.array(
    [-1, 0, 0, 0, 1, 2, 3, 4, 5, 6, 7, 8, 9, 9, 9, 12, 13, 14, 16, 17, 18, 19,
     20, 22, 23, 20, 25, 26, 20, 28, 29, 20, 31, 32, 20, 34, 35,
     21, 37, 38, 21, 40, 41, 21, 43, 44, 21, 46, 47, 21, 49, 50],
    dtype=np.int32)

JOINTS_EXTRACTOR = {
    'smpljoints': np.concatenate([np.arange(23), np.array([37])]).astype(np.int32)
}


def _round_up(x, m):
    return ((x + m - 1) // m) * m


def _largest_tile(total, cap=2048):
    """Largest 128-multiple divisor of `total` that is <= cap (total is a 128-mult)."""
    best = 128
    t = 128
    while t <= min(cap, total):
        if total % t == 0:
            best = t
        t += 128
    return best


# lane-padded planar layout sizes (constants of the model, known at trace time)
V_PAD = _round_up(NUM_VERTS, 128)           # vertices padded per plane to a lane tile
J3 = 3 * NUM_JOINTS                         # 156
W_RAW = 3 * V_PAD + J3                      # [x|y|z planes | joints] columns
W_PAD = _round_up(W_RAW, 128)               # blend output width (lane aligned)
BLEND_LANE_TILE = _largest_tile(W_PAD)      # lane tile for the blend kernel grid
SKIN_LANE_TILE = _largest_tile(V_PAD)       # lane tile (per plane) for the skin kernel


# ------------------------ kinematic tree (level tables) ----------------------
def _build_tree_tables(parents):
    """Group joints by depth; parents of depth-d joints live in depth d-1."""
    parents = np.asarray(parents)
    J = len(parents)
    depth = np.zeros(J, dtype=np.int64)
    for i in range(1, J):
        depth[i] = depth[parents[i]] + 1
    levels = []
    for d in range(int(depth.max()) + 1):
        levels.append(np.nonzero(depth == d)[0].astype(np.int32))
    parent_pos = []
    for d in range(1, len(levels)):
        prev_pos = {int(j): k for k, j in enumerate(levels[d - 1])}
        parent_pos.append(np.array([prev_pos[int(parents[j])] for j in levels[d]],
                                   dtype=np.int32))
    perm = np.concatenate(levels)
    inv_perm = np.argsort(perm).astype(np.int32)
    return levels, parent_pos, inv_perm


TREE_LEVELS, TREE_PARENT_POS, TREE_INV_PERM = _build_tree_tables(SMPLH_PARENTS)


# ------------------------------ Pallas kernels -------------------------------
def _blend_kernel(coeff_ref, bdirs_ref, tmpl_ref, out_ref):
    """[v_posed planar | joints] tile = template + [betas|pose_feat] @ blenddirs tile.

    coeff: (N_pad, 475) bf16 (full block, reused every grid step)
    bdirs: (475, TILE)  bf16, tmpl: (1, TILE) f32, out: (N_pad, TILE) f32.
    """
    out_ref[...] = tmpl_ref[...] + jnp.dot(
        coeff_ref[...], bdirs_ref[...], preferred_element_type=jnp.float32)


def _skin_kernel(a12_ref, wt_ref, x_ref, y_ref, z_ref, verts_ref):
    """LBS skinning for one lane tile of V.

    a12:  (12*N_pad, J) rows ordered [(r*4+c)*N_pad + n] = A[n, j, r, c]   (r < 3)
    wt:   (J, TILE) = lbs_weights^T tile
    x/y/z: (N_pad, TILE) planes of v_posed
    verts: (3, N_pad, TILE) planar output.
    """
    n_pad = x_ref.shape[0]
    t_all = jnp.dot(a12_ref[...], wt_ref[...],
                    preferred_element_type=jnp.float32)        # (12*N_pad, TILE)
    x = x_ref[...]
    y = y_ref[...]
    z = z_ref[...]

    def row(k):                                                # T[n, v, k//4, k%4]
        return t_all[k * n_pad:(k + 1) * n_pad, :]

    verts_ref[0, :, :] = row(0) * x + row(1) * y + row(2) * z + row(3)
    verts_ref[1, :, :] = row(4) * x + row(5) * y + row(6) * z + row(7)
    verts_ref[2, :, :] = row(8) * x + row(9) * y + row(10) * z + row(11)


def blend_call(coeff_bf16, blenddirs, template_row):
    n_pad, k = coeff_bf16.shape
    w_pad = blenddirs.shape[1]
    tile = BLEND_LANE_TILE
    return pl.pallas_call(
        _blend_kernel,
        out_shape=jax.ShapeDtypeStruct((n_pad, w_pad), jnp.float32),
        grid=(w_pad // tile,),
        in_specs=[pl.BlockSpec((n_pad, k), lambda j: (0, 0)),
                  pl.BlockSpec((k, tile), lambda j: (0, j)),
                  pl.BlockSpec((1, tile), lambda j: (0, j))],
        out_specs=pl.BlockSpec((n_pad, tile), lambda j: (0, j)),
        compiler_params=pltpu.CompilerParams(
            dimension_semantics=("parallel",)),
    )(coeff_bf16, blenddirs, template_row)


def skin_call(a12, lbs_weights_t, blend_out):
    n12, j = a12.shape
    n_pad = n12 // 12
    tile = SKIN_LANE_TILE
    nvt = V_PAD // tile
    return pl.pallas_call(
        _skin_kernel,
        out_shape=jax.ShapeDtypeStruct((3, n_pad, V_PAD), jnp.float32),
        grid=(nvt,),
        in_specs=[
            pl.BlockSpec((n12, j), lambda jj: (0, 0)),
            pl.BlockSpec((j, tile), lambda jj: (0, jj)),
            # x / y / z planes of the blend output, read in place via lane offsets
            pl.BlockSpec((n_pad, tile), lambda jj: (0, jj)),
            pl.BlockSpec((n_pad, tile), lambda jj: (0, jj + nvt)),
            pl.BlockSpec((n_pad, tile), lambda jj: (0, jj + 2 * nvt)),
        ],
        out_specs=pl.BlockSpec((3, n_pad, tile), lambda jj: (0, 0, jj)),
        compiler_params=pltpu.CompilerParams(
            dimension_semantics=("parallel",)),
    )(a12, lbs_weights_t, blend_out, blend_out, blend_out)


# ------------------------------ plain JAX glue --------------------------------
def rodrigues(aa):
    """axis-angle (..., 3) -> rotation matrix (..., 3, 3). Matches smplx batch_rodrigues."""
    angle = jnp.linalg.norm(aa + 1e-8, axis=-1, keepdims=True)
    axis = aa / angle
    x, y, z = axis[..., 0], axis[..., 1], axis[..., 2]
    zeros = jnp.zeros_like(x)
    K = jnp.stack([zeros, -z, y, z, zeros, -x, -y, x, zeros],
                  axis=-1).reshape(aa.shape[:-1] + (3, 3))
    s = jnp.sin(angle)[..., None]
    c = jnp.cos(angle)[..., None]
    eye = jnp.eye(3, dtype=aa.dtype)
    return eye + s * K + (1.0 - c) * (K @ K)


def batch_rigid_transform_levels(rot_mats, joints, parents):
    """Level-batched kinematic chain on (R, t) pairs; no sequential scatters.

    rot_mats (N,J,3,3), joints (N,J,3) -> posed joints (N,J,3),
    world rotations (N,J,3,3), relative translations t_rel (N,J,3).
    """
    rel_joints = jnp.concatenate(
        [joints[:, :1], joints[:, 1:] - joints[:, parents[1:]]], axis=1)
    r_lv = [rot_mats[:, TREE_LEVELS[0]]]
    t_lv = [rel_joints[:, TREE_LEVELS[0]]]
    for d in range(1, len(TREE_LEVELS)):
        idx = TREE_LEVELS[d]
        pos = TREE_PARENT_POS[d - 1]
        rp = r_lv[-1][:, pos]
        tp = t_lv[-1][:, pos]
        rw = jnp.einsum('nkab,nkbc->nkac', rp, rot_mats[:, idx])
        tw = jnp.einsum('nkab,nkb->nka', rp, rel_joints[:, idx]) + tp
        r_lv.append(rw)
        t_lv.append(tw)
    # one static permutation gather instead of 2 scatters per level
    r_world = jnp.concatenate(r_lv, axis=1)[:, TREE_INV_PERM]
    t_world = jnp.concatenate(t_lv, axis=1)[:, TREE_INV_PERM]
    posed_joints = t_world
    t_rel = t_world - jnp.einsum('njab,njb->nja', r_world, joints)
    return posed_joints, r_world, t_rel


def batch_rigid_transform_reference(rot_mats, joints, parents):
    """Sequential 4x4 chain, mirrors smplx.lbs.batch_rigid_transform (reference only)."""
    N, J = joints.shape[:2]
    rel_joints = joints.at[:, 1:].add(-joints[:, parents[1:]])
    top = jnp.concatenate([rot_mats, rel_joints[..., None]], axis=-1)        # (N,J,3,4)
    bottom = jnp.broadcast_to(jnp.array([0.0, 0.0, 0.0, 1.0], joints.dtype),
                              (N, J, 1, 4))
    transforms_mat = jnp.concatenate([top, bottom], axis=-2)                 # (N,J,4,4)

    chain = [transforms_mat[:, 0]]
    for i in range(1, J):
        chain.append(chain[int(parents[i])] @ transforms_mat[:, i])
    transforms = jnp.stack(chain, axis=1)                                    # (N,J,4,4)

    posed_joints = transforms[:, :, :3, 3]
    joints_hom = jnp.concatenate(
        [joints, jnp.zeros((N, J, 1), joints.dtype)], axis=-1)[..., None]    # (N,J,4,1)
    tj = transforms @ joints_hom                                             # (N,J,4,1)
    rel_transforms = transforms - jnp.concatenate(
        [jnp.zeros((N, J, 4, 3), joints.dtype), tj], axis=-1)
    return posed_joints, rel_transforms


def make_params(key):
    """Deterministic synthetic SMPL-H parameters + precomputed lane-dense layouts."""
    ks = jax.random.split(key, 8)
    V, B, J = NUM_VERTS, NUM_BETAS, NUM_JOINTS
    v_template = 0.5 * jax.random.normal(ks[0], (V, 3), jnp.float32)
    shapedirs = 0.02 * jax.random.normal(ks[1], (V, 3, B), jnp.float32)
    posedirs = 0.002 * jax.random.normal(ks[2], (POSE_FEAT, V, 3), jnp.float32)
    jreg = jax.random.uniform(ks[3], (J, V), jnp.float32) ** 4
    jreg = jreg / jnp.sum(jreg, axis=1, keepdims=True)
    w = jax.random.uniform(ks[4], (V, J), jnp.float32) ** 8
    w = w / jnp.sum(w, axis=1, keepdims=True)
    left_hand_mean = 0.1 * jax.random.normal(ks[5], (45,), jnp.float32)
    right_hand_mean = 0.1 * jax.random.normal(ks[6], (45,), jnp.float32)

    params = {
        'v_template': v_template, 'shapedirs': shapedirs, 'posedirs': posedirs,
        'J_regressor': jreg, 'lbs_weights': w,
        'left_hand_mean': left_hand_mean, 'right_hand_mean': right_hand_mean,
    }

    # --- planar, lane-padded layouts for the Pallas kernels -------------------
    # vposed section (475, 3*V_PAD): planar [x-plane | y-plane | z-plane],
    # each plane padded to a 128 multiple and ZERO-filled in the padding.
    shp_pl = jnp.zeros((B, 3, V_PAD), jnp.float32).at[:, :, :V].set(
        shapedirs.transpose(2, 1, 0))
    pos_pl = jnp.zeros((POSE_FEAT, 3, V_PAD), jnp.float32).at[:, :, :V].set(
        posedirs.transpose(0, 2, 1))
    vdirs = jnp.concatenate([shp_pl.reshape(B, 3 * V_PAD),
                             pos_pl.reshape(POSE_FEAT, 3 * V_PAD)], axis=0)
    # joints section (475, 3*J): betas->joints regressor folded (exact),
    # zero rows for the pose-feature block.
    jointdirs = jnp.einsum('jv,vcb->bjc', jreg, shapedirs).reshape(B, J3)
    jdirs = jnp.concatenate(
        [jointdirs, jnp.zeros((POSE_FEAT, J3), jnp.float32)], axis=0)
    blenddirs = jnp.concatenate(
        [vdirs, jdirs, jnp.zeros((NUM_COEFF, W_PAD - W_RAW), jnp.float32)], axis=1)
    # weight-stream dominant operand -> bf16 (f32 accumulation in the kernel).
    params['blenddirs'] = blenddirs.astype(jnp.bfloat16)

    vtmpl_pl = jnp.zeros((3, V_PAD), jnp.float32).at[:, :V].set(
        v_template.T).reshape(1, 3 * V_PAD)
    jtmpl = (jreg @ v_template).reshape(1, J3)
    params['template_row'] = jnp.concatenate(
        [vtmpl_pl, jtmpl, jnp.zeros((1, W_PAD - W_RAW), jnp.float32)], axis=1)

    # lbs weights transposed & lane-padded (zero fill), kept f32 (tiny operand).
    params['lbs_weights_T'] = jnp.zeros((J, V_PAD), jnp.float32).at[:, :V].set(w.T)
    return params


@jax.jit
def lbs_pallas(params, full_pose, betas_all):
    """full_pose (N, 52, 3, 3), betas_all (N, 16) -> vertices (N, V, 3), joints (N, 52, 3)."""
    N = full_pose.shape[0]
    n_pad = _round_up(N, 8)          # sublane alignment for the (8,128) tile grid

    eye = jnp.eye(3, dtype=full_pose.dtype)
    pose_feat = (full_pose[:, 1:] - eye).reshape(N, POSE_FEAT)
    coeff = jnp.concatenate([betas_all, pose_feat], axis=1)                 # (N, 475)
    coeff = jnp.pad(coeff, ((0, n_pad - N), (0, 0))).astype(jnp.bfloat16)

    # one MXU pass -> [v_posed planar | joints] lane-dense slab
    vj = blend_call(coeff, params['blenddirs'], params['template_row'])     # (n_pad, W_PAD)

    joints = vj[:N, 3 * V_PAD:3 * V_PAD + J3].reshape(N, NUM_JOINTS, 3)

    posed_joints, r_world, t_rel = batch_rigid_transform_levels(
        full_pose, joints, SMPLH_PARENTS)

    # Rows 0..2 of the per-joint relative transforms, laid out (12*n_pad, J).
    a12 = jnp.concatenate([r_world, t_rel[..., None]], axis=-1)             # (N, J, 3, 4)
    a12 = jnp.pad(a12, ((0, n_pad - N), (0, 0), (0, 0), (0, 0)))
    a12 = a12.transpose(2, 3, 0, 1).reshape(12 * n_pad, NUM_JOINTS)

    verts_planar = skin_call(a12, params['lbs_weights_T'], vj)              # (3, n_pad, V_PAD)
    # TODO(synk): a planar-consuming downstream could skip this final transpose copy.
    verts = verts_planar[:, :N, :NUM_VERTS].transpose(1, 2, 0)              # (N, V, 3)
    return verts, posed_joints


@jax.jit
def lbs_reference(params, full_pose, betas_all):
    """Pure-JAX reference following the original smplx-style LBS structure."""
    N = full_pose.shape[0]
    v_shaped = params['v_template'][None] + jnp.einsum(
        'nb,vcb->nvc', betas_all, params['shapedirs'])
    eye = jnp.eye(3, dtype=full_pose.dtype)
    pose_feat = (full_pose[:, 1:] - eye).reshape(N, POSE_FEAT)
    v_posed = v_shaped + jnp.einsum('np,pvc->nvc', pose_feat, params['posedirs'])
    joints = jnp.einsum('jv,nvc->njc', params['J_regressor'], v_shaped)
    posed_joints, A = batch_rigid_transform_reference(full_pose, joints, SMPLH_PARENTS)
    T = jnp.einsum('vj,njab->nvab', params['lbs_weights'], A)
    verts = jnp.einsum('nvab,nvb->nva', T[..., :3, :3], v_posed) + T[..., :3, 3]
    return verts, posed_joints


def smplh_forward(params, poses, trans, betas=None, jointstype='smpljoints',
                  use_pallas=True):
    """Mirrors SMPLH.forward with input_pose_rep='matrix'.

    poses: (b, l, P, 3, 3) rotation matrices with P in {52, 22}
    trans: (b, l, 3); betas: (16,) or None.
    """
    needs_to_squeeze = False
    if trans.ndim == 2:
        needs_to_squeeze = True
        poses = poses[None]
        trans = trans[None]

    matrix_poses = poses  # input_pose_rep == 'matrix' -> to_matrix is identity
    save_shape_bs_len = matrix_poses.shape[:-3]
    nposes = int(np.prod(save_shape_bs_len))

    if matrix_poses.shape[-3] == 52:
        nohands = False
    elif matrix_poses.shape[-3] == 22:
        nohands = True
    else:
        raise NotImplementedError('Could not parse the poses.')

    matrix_poses = matrix_poses.reshape((nposes,) + matrix_poses.shape[-3:])
    global_orient = matrix_poses[:, 0:1]
    body_pose = matrix_poses[:, 1:22]
    trans_all = trans.reshape(nposes, 3)

    if nohands:
        lh = rodrigues(params['left_hand_mean'].reshape(15, 3))
        rh = rodrigues(params['right_hand_mean'].reshape(15, 3))
        left_hand_pose = jnp.broadcast_to(lh[None], (nposes, 15, 3, 3))
        right_hand_pose = jnp.broadcast_to(rh[None], (nposes, 15, 3, 3))
    else:
        hand_pose = matrix_poses[:, 22:]
        left_hand_pose = hand_pose[:, :15]
        right_hand_pose = hand_pose[:, 15:]

    if betas is None:
        betas_all = jnp.zeros((nposes, NUM_BETAS), jnp.float32)
    else:
        betas_all = jnp.broadcast_to(betas[None], (nposes, NUM_BETAS))

    full_pose = jnp.concatenate(
        [global_orient, body_pose, left_hand_pose, right_hand_pose], axis=1)

    # call_by_chunks: nposes << batch_size (512) -> a single chunk here.
    fn = lbs_pallas if use_pallas else lbs_reference
    verts, joints = fn(params, full_pose, betas_all)
    verts = verts + trans_all[:, None, :]
    joints = joints + trans_all[:, None, :]

    if jointstype == 'vertices':
        out = verts
    else:
        out = joints[:, JOINTS_EXTRACTOR['smpljoints']]

    out = out.reshape(save_shape_bs_len + out.shape[1:])
    if needs_to_squeeze:
        out = out[0]
    return out


# ----------------------------------- main -------------------------------------
if __name__ == "__main__":
    key = jax.random.PRNGKey(0)
    k_param, k_pose, k_trans, k_betas = jax.random.split(key, 4)

    params = make_params(k_param)

    b, l = 2, 4  # small batch of pose sequences -> nposes = 8
    aa = 0.2 * jax.random.normal(k_pose, (b, l, NUM_JOINTS, 3), jnp.float32)
    poses = rodrigues(aa)                                    # (2, 4, 52, 3, 3)
    trans = 0.1 * jax.random.normal(k_trans, (b, l, 3), jnp.float32)
    betas = 0.5 * jax.random.normal(k_betas, (NUM_BETAS,), jnp.float32)

    joints_out = jax.block_until_ready(
        smplh_forward(params, poses, trans, betas, jointstype='smpljoints',
                      use_pallas=True))
    verts_out = jax.block_until_ready(
        smplh_forward(params, poses, trans, betas, jointstype='vertices',
                      use_pallas=True))
    assert joints_out.shape == (b, l, 24, 3), joints_out.shape
    assert verts_out.shape == (b, l, NUM_VERTS, 3), verts_out.shape

    joints_ref = jax.block_until_ready(
        smplh_forward(params, poses, trans, betas, jointstype='smpljoints',
                      use_pallas=False))
    verts_ref = jax.block_until_ready(
        smplh_forward(params, poses, trans, betas, jointstype='vertices',
                      use_pallas=False))

    # tolerance loosened slightly vs. f32-only version to cover bf16 weight
    # quantization of blenddirs / coeff (dominant weight stream).
    np.testing.assert_allclose(np.asarray(joints_out), np.asarray(joints_ref),
                               rtol=1e-2, atol=1e-2)
    np.testing.assert_allclose(np.asarray(verts_out), np.asarray(verts_ref),
                               rtol=1e-2, atol=1e-2)

    print("KERNEL_OK")
</pallas_src>

<mosaic_0001>
module attributes {stable_mosaic.version = 11 : i64} {
  func.func @_blend_kernel(%arg0: i32, %arg1: memref<8x475xbf16, #tpu.memory_space<vmem>>, %arg2: memref<475x640xbf16, #tpu.memory_space<vmem>>, %arg3: memref<1x640xf32, #tpu.memory_space<vmem>>, %arg4: memref<8x640xf32, #tpu.memory_space<vmem>>) attributes {dimension_semantics = [#tpu.dimension_semantics<parallel>], iteration_bounds = array<i64: 1>, scalar_prefetch = 0 : i64, scratch_operands = 0 : i64, tpu.core_type = #tpu.core_type<tc>, window_params = [{pipeline_mode = #tpu.pipeline_mode<synchronous>, transform_indices = @transform_0, window_bounds = array<i64: 8, 475>}, {transform_indices = @transform_1, window_bounds = array<i64: 475, 640>}, {transform_indices = @transform_2, window_bounds = array<i64: 1, 640>}, {transform_indices = @transform_3, window_bounds = array<i64: 8, 640>}]} {
    %c0 = arith.constant 0 : index
    %c0_0 = arith.constant 0 : index
    %0 = vector.load %arg3[%c0, %c0_0] : memref<1x640xf32, #tpu.memory_space<vmem>>, vector<1x640xf32>
    %c0_1 = arith.constant 0 : index
    %c0_2 = arith.constant 0 : index
    %1 = vector.load %arg1[%c0_1, %c0_2] : memref<8x475xbf16, #tpu.memory_space<vmem>>, vector<8x475xbf16>
    %c0_3 = arith.constant 0 : index
    %c0_4 = arith.constant 0 : index
    %2 = vector.load %arg2[%c0_3, %c0_4] : memref<475x640xbf16, #tpu.memory_space<vmem>>, vector<475x640xbf16>
    %cst = arith.constant dense<0.000000e+00> : vector<8x640xf32>
    %3 = tpu.matmul %1, %2, %cst {dimension_numbers = #tpu.dot_dimension_numbers<[1], [0], [0], [1], [0, 0, 1, 1], [], []>} : vector<8x475xbf16>, vector<475x640xbf16>, vector<8x640xf32> -> vector<8x640xf32>
    %4 = vector.broadcast %0 : vector<1x640xf32> to vector<8x640xf32>
    %5 = arith.addf %4, %3 : vector<8x640xf32>
    %c0_5 = arith.constant 0 : index
    %c0_6 = arith.constant 0 : index
    %6 = vector.load %arg4[%c0_5, %c0_6] : memref<8x640xf32, #tpu.memory_space<vmem>>, vector<8x640xf32>
    tpu.vector_store %arg4[%c0_5, %c0_6], %5 {strides = array<i32>} : memref<8x640xf32, #tpu.memory_space<vmem>>, vector<8x640xf32>,
    return
  }
  func.func @transform_0(%arg0: i32) -> (i32, i32) {
    %c0_i32 = arith.constant 0 : i32
    %c0_i32_0 = arith.constant 0 : i32
    %c0_i32_1 = arith.constant 0 : i32
    return %c0_i32, %c0_i32_0 : i32, i32
  }
  func.func @transform_1(%arg0: i32) -> (i32, i32) {
    %c0_i32 = arith.constant 0 : i32
    %c0_i32_0 = arith.constant 0 : i32
    return %c0_i32, %arg0 : i32, i32
  }
  func.func @transform_2(%arg0: i32) -> (i32, i32) {
    %c0_i32 = arith.constant 0 : i32
    %c0_i32_0 = arith.constant 0 : i32
    return %c0_i32, %arg0 : i32, i32
  }
  func.func @transform_3(%arg0: i32) -> (i32, i32) {
    %c0_i32 = arith.constant 0 : i32
    %c0_i32_0 = arith.constant 0 : i32
    return %c0_i32, %arg0 : i32, i32
  }
}

module attributes {stable_mosaic.version = 11 : i64} {
  func.func @_skin_kernel(%arg0: i32, %arg1: memref<96x52xf32, #tpu.memory_space<vmem>>, %arg2: memref<52x128xf32, #tpu.memory_space<vmem>>, %arg3: memref<8x128xf32, #tpu.memory_space<vmem>>, %arg4: memref<8x128xf32, #tpu.memory_space<vmem>>, %arg5: memref<8x128xf32, #tpu.memory_space<vmem>>, %arg6: memref<3x8x128xf32, #tpu.memory_space<vmem>>) attributes {dimension_semantics = [#tpu.dimension_semantics<parallel>], iteration_bounds = array<i64: 1>, scalar_prefetch = 0 : i64, scratch_operands = 0 : i64, tpu.core_type = #tpu.core_type<tc>, window_params = [{pipeline_mode = #tpu.pipeline_mode<synchronous>, transform_indices = @transform_0, window_bounds = array<i64: 96, 52>}, {transform_indices = @transform_1, window_bounds = array<i64: 52, 128>}, {transform_indices = @transform_2, window_bounds = array<i64: 8, 128>}, {transform_indices = @transform_3, window_bounds = array<i64: 8, 128>}, {transform_indices = @transform_4, window_bounds = array<i64: 8, 128>}, {transform_indices = @transform_5, window_bounds = array<i64: 3, 8, 128>}]} {
    %c0 = arith.constant 0 : index
    %c0_0 = arith.constant 0 : index
    %0 = vector.load %arg1[%c0, %c0_0] : memref<96x52xf32, #tpu.memory_space<vmem>>, vector<96x52xf32>
    %c0_1 = arith.constant 0 : index
    %c0_2 = arith.constant 0 : index
    %1 = vector.load %arg2[%c0_1, %c0_2] : memref<52x128xf32, #tpu.memory_space<vmem>>, vector<52x128xf32>
    %cst = arith.constant dense<0.000000e+00> : vector<96x128xf32>
    %2 = tpu.matmul %0, %1, %cst {dimension_numbers = #tpu.dot_dimension_numbers<[1], [0], [0], [1], [0, 0, 1, 1], [], []>} : vector<96x52xf32>, vector<52x128xf32>, vector<96x128xf32> -> vector<96x128xf32>
    %c0_3 = arith.constant 0 : index
    %c0_4 = arith.constant 0 : index
    %3 = vector.load %arg3[%c0_3, %c0_4] : memref<8x128xf32, #tpu.memory_space<vmem>>, vector<8x128xf32>
    %c0_5 = arith.constant 0 : index
    %c0_6 = arith.constant 0 : index
    %4 = vector.load %arg4[%c0_5, %c0_6] : memref<8x128xf32, #tpu.memory_space<vmem>>, vector<8x128xf32>
    %c0_7 = arith.constant 0 : index
    %c0_8 = arith.constant 0 : index
    %5 = vector.load %arg5[%c0_7, %c0_8] : memref<8x128xf32, #tpu.memory_space<vmem>>, vector<8x128xf32>
    %6 = vector.extract_strided_slice %2 {offsets = [0, 0], sizes = [8, 128], strides = [1, 1]} : vector<96x128xf32> to vector<8x128xf32>
    %7 = arith.mulf %6, %3 : vector<8x128xf32>
    %8 = vector.extract_strided_slice %2 {offsets = [8, 0], sizes = [8, 128], strides = [1, 1]} : vector<96x128xf32> to vector<8x128xf32>
    %9 = arith.mulf %8, %4 : vector<8x128xf32>
    %10 = arith.addf %7, %9 : vector<8x128xf32>
    %11 = vector.extract_strided_slice %2 {offsets = [16, 0], sizes = [8, 128], strides = [1, 1]} : vector<96x128xf32> to vector<8x128xf32>
    %12 = arith.mulf %11, %5 : vector<8x128xf32>
    %13 = arith.addf %10, %12 : vector<8x128xf32>
    %14 = vector.extract_strided_slice %2 {offsets = [24, 0], sizes = [8, 128], strides = [1, 1]} : vector<96x128xf32> to vector<8x128xf32>
    %15 = arith.addf %13, %14 : vector<8x128xf32>
    %c0_9 = arith.constant 0 : index
    %c0_10 = arith.constant 0 : index
    %c0_11 = arith.constant 0 : index
    %16 = vector.load %arg6[%c0_9, %c0_10, %c0_11] : memref<3x8x128xf32, #tpu.memory_space<vmem>>, vector<1x8x128xf32>
    %17 = vector.shape_cast %16 : vector<1x8x128xf32> to vector<8x128xf32>
    %18 = vector.shape_cast %15 : vector<8x128xf32> to vector<1x8x128xf32>
    tpu.vector_store %arg6[%c0_9, %c0_10, %c0_11], %18 {strides = array<i32>} : memref<3x8x128xf32, #tpu.memory_space<vmem>>, vector<1x8x128xf32>,
    %19 = vector.extract_strided_slice %2 {offsets = [32, 0], sizes = [8, 128], strides = [1, 1]} : vector<96x128xf32> to vector<8x128xf32>
    %20 = arith.mulf %19, %3 : vector<8x128xf32>
    %21 = vector.extract_strided_slice %2 {offsets = [40, 0], sizes = [8, 128], strides = [1, 1]} : vector<96x128xf32> to vector<8x128xf32>
    %22 = arith.mulf %21, %4 : vector<8x128xf32>
    %23 = arith.addf %20, %22 : vector<8x128xf32>
    %24 = vector.extract_strided_slice %2 {offsets = [48, 0], sizes = [8, 128], strides = [1, 1]} : vector<96x128xf32> to vector<8x128xf32>
    %25 = arith.mulf %24, %5 : vector<8x128xf32>
    %26 = arith.addf %23, %25 : vector<8x128xf32>
    %27 = vector.extract_strided_slice %2 {offsets = [56, 0], sizes = [8, 128], strides = [1, 1]} : vector<96x128xf32> to vector<8x128xf32>
    %28 = arith.addf %26, %27 : vector<8x128xf32>
    %c1 = arith.constant 1 : index
    %c0_12 = arith.constant 0 : index
    %c0_13 = arith.constant 0 : index
    %29 = vector.load %arg6[%c1, %c0_12, %c0_13] : memref<3x8x128xf32, #tpu.memory_space<vmem>>, vector<1x8x128xf32>
    %30 = vector.shape_cast %29 : vector<1x8x128xf32> to vector<8x128xf32>
    %31 = vector.shape_cast %28 : vector<8x128xf32> to vector<1x8x128xf32>
    tpu.vector_store %arg6[%c1, %c0_12, %c0_13], %31 {strides = array<i32>} : memref<3x8x128xf32, #tpu.memory_space<vmem>>, vector<1x8x128xf32>,
    %32 = vector.extract_strided_slice %2 {offsets = [64, 0], sizes = [8, 128], strides = [1, 1]} : vector<96x128xf32> to vector<8x128xf32>
    %33 = arith.mulf %32, %3 : vector<8x128xf32>
    %34 = vector.extract_strided_slice %2 {offsets = [72, 0], sizes = [8, 128], strides = [1, 1]} : vector<96x128xf32> to vector<8x128xf32>
    %35 = arith.mulf %34, %4 : vector<8x128xf32>
    %36 = arith.addf %33, %35 : vector<8x128xf32>
    %37 = vector.extract_strided_slice %2 {offsets = [80, 0], sizes = [8, 128], strides = [1, 1]} : vector<96x128xf32> to vector<8x128xf32>
    %38 = arith.mulf %37, %5 : vector<8x128xf32>
    %39 = arith.addf %36, %38 : vector<8x128xf32>
    %40 = vector.extract_strided_slice %2 {offsets = [88, 0], sizes = [8, 128], strides = [1, 1]} : vector<96x128xf32> to vector<8x128xf32>
    %41 = arith.addf %39, %40 : vector<8x128xf32>
    %c2 = arith.constant 2 : index
    %c0_14 = arith.constant 0 : index
    %c0_15 = arith.constant 0 : index
    %42 = vector.load %arg6[%c2, %c0_14, %c0_15] : memref<3x8x128xf32, #tpu.memory_space<vmem>>, vector<1x8x128xf32>
    %43 = vector.shape_cast %42 : vector<1x8x128xf32> to vector<8x128xf32>
    %44 = vector.shape_cast %41 : vector<8x128xf32> to vector<1x8x128xf32>
    tpu.vector_store %arg6[%c2, %c0_14, %c0_15], %44 {strides = array<i32>} : memref<3x8x128xf32, #tpu.memory_space<vmem>>, vector<1x8x128xf32>,
    return
  }
  func.func @transform_0(%arg0: i32) -> (i32, i32) {
    %c0_i32 = arith.constant 0 : i32
    %c0_i32_0 = arith.constant 0 : i32
    %c0_i32_1 = arith.constant 0 : i32
    return %c0_i32, %c0_i32_0 : i32, i32
  }
  func.func @transform_1(%arg0: i32) -> (i32, i32) {
    %c0_i32 = arith.constant 0 : i32
    %c0_i32_0 = arith.constant 0 : i32
    return %c0_i32, %arg0 : i32, i32
  }
  func.func @transform_2(%arg0: i32) -> (i32, i32) {
    %c0_i32 = arith.constant 0 : i32
    %c0_i32_0 = arith.constant 0 : i32
    return %c0_i32, %arg0 : i32, i32
  }
  func.func @transform_3(%arg0: i32) -> (i32, i32) {
    %c1_i32 = arith.constant 1 : i32
    %0 = arith.addi %arg0, %c1_i32 : i32
    %c0_i32 = arith.constant 0 : i32
    %c0_i32_0 = arith.constant 0 : i32
    return %c0_i32, %0 : i32, i32
  }
  func.func @transform_4(%arg0: i32) -> (i32, i32) {
    %c2_i32 = arith.constant 2 : i32
    %0 = arith.addi %arg0, %c2_i32 : i32
    %c0_i32 = arith.constant 0 : i32
    %c0_i32_0 = arith.constant 0 : i32
    return %c0_i32, %0 : i32, i32
  }
  func.func @transform_5(%arg0: i32) -> (i32, i32, i32) {
    %c0_i32 = arith.constant 0 : i32
    %c0_i32_0 = arith.constant 0 : i32
    %c0_i32_1 = arith.constant 0 : i32
    return %c0_i32, %c0_i32_0, %arg0 : i32, i32, i32
  }
}

</mosaic_0001>

<llo_original>
// kernel: lbs_pallas.2
$region0: #{lbs_pallas.2}
  #allocation0 [shape = 'u32[]', space=smem, size = 0x4, offset = 0x4, fixed_abs, tag = 'smem constant byte address 0x4 - core index']
  #allocation1 [shape = 'u32[144,128]{1,0:T(1,128)}', space=vmem, size = 0x12000, scoped, tag = 'internal scratch']
  %s0 = inlined_call_operand.vmem [shape: bf16[8,475], index: 0, kind: input, shape index: {}]
  %s1 = inlined_call_operand.vmem [shape: bf16[475,640], index: 1, kind: input, shape index: {}]
  %s2 = inlined_call_operand.vmem [shape: f32[1,640], index: 2, kind: input, shape index: {}]
  %s3 = inlined_call_operand.vmem [shape: f32[8,640], index: 3, kind: output, shape index: {}]
  %s4 = sld [smem:[#allocation0]]
  $region22: #{lbs_pallas.2} parent=0
    _
  %s6 = ssub.s32 1, %s4
  %s7 = scalar_select 0, %s6, %s4
  // Predicated region
  $region2: #{lbs_pallas.2} parent=0 // pred_check
    _
  $region3: #{lbs_pallas.2} parent=0 // pred_check_branch
    %9 = sbr.rel (0) target = $region5
  $region4: #{lbs_pallas.2} parent=0 // pred_region
    _
  $region5: #{lbs_pallas.2} parent=0 // pred_fallthru
    _
  // Predicated region
  $region6: #{lbs_pallas.2} parent=0 // pred_check
    _
  $region7: #{lbs_pallas.2} parent=0 // pred_check_branch
    %11 = sbr.rel (0) target = $region9
  $region8: #{lbs_pallas.2} parent=0 // pred_region
    _
  $region9: #{lbs_pallas.2} parent=0 // pred_fallthru
    _
  // Predicated region
  $region10: #{lbs_pallas.2} parent=0 // pred_check
    _
  $region11: #{lbs_pallas.2} parent=0 // pred_check_branch
    %13 = sbr.rel (0) target = $region13
  $region12: #{lbs_pallas.2} parent=0 // pred_region
    _
  $region13: #{lbs_pallas.2} parent=0 // pred_fallthru
    _
  %v15 = vld [vmem:[%s2] sm:$0x1f]
  %v16 = vld [vmem:[%s0] sm:$0xff]
  %v17 = vld [vmem:[%s0 + $0x8] sm:$0xff]
  %v18 = vld [vmem:[%s1] sm:$0xff]
  %v19 = vld [vmem:[%s1 + $0x8] sm:$0xff]
  %v20 = vld [vmem:[%s1 + $0x10] sm:$0xf]
  %v21 = vld [vmem:[%s1 + $0x14] sm:$0xff]
  %v22 = vld [vmem:[%s1 + $0x1c] sm:$0xff]
  %v23 = vld [vmem:[%s1 + $0x24] sm:$0xf]
  %v24 = vld [vmem:[%s1 + $0x28] sm:$0xff]
  %v25 = vld [vmem:[%s1 + $0x30] sm:$0xff]
  %v26 = vld [vmem:[%s1 + $0x38] sm:$0xf]
  %v27 = vld [vmem:[%s1 + $0x3c] sm:$0xff]
  %v28 = vld [vmem:[%s1 + $0x44] sm:$0xff]
  %v29 = vld [vmem:[%s1 + $0x4c] sm:$0xf]
  %v30 = vld [vmem:[%s1 + $0x50] sm:$0xff]
  %v31 = vld [vmem:[%s1 + $0x58] sm:$0xff]
  %v32 = vld [vmem:[%s1 + $0x60] sm:$0xf]
  %v33 = vld [vmem:[%s1 + $0x64] sm:$0xff]
  %v34 = vld [vmem:[%s1 + $0x6c] sm:$0xff]
  %v35 = vld [vmem:[%s1 + $0x74] sm:$0xf]
  %v36 = vld [vmem:[%s1 + $0x78] sm:$0xff]
  %v37 = vld [vmem:[%s1 + $0x80] sm:$0xff]
  %v38 = vld [vmem:[%s1 + $0x88] sm:$0xf]
  %v39 = vld [vmem:[%s1 + $0x8c] sm:$0xff]
  %v40 = vld [vmem:[%s1 + $0x94] sm:$0xff]
  %v41 = vld [vmem:[%s1 + $0x9c] sm:$0xf]
  %v42 = vld [vmem:[%s1 + $0xa0] sm:$0xff]
  %v43 = vld [vmem:[%s1 + $0xa8] sm:$0xff]
  %v44 = vld [vmem:[%s1 + $0xb0] sm:$0xf]
  %v45 = vld [vmem:[%s1 + $0xb4] sm:$0xff]
  %v46 = vld [vmem:[%s1 + $0xbc] sm:$0xff]
  %v47 = vld [vmem:[%s1 + $0xc4] sm:$0xf]
  %v48 = vld [vmem:[%s1 + $0xc8] sm:$0xff]
  %v49 = vld [vmem:[%s1 + $0xd0] sm:$0xff]
  %v50 = vld [vmem:[%s1 + $0xd8] sm:$0xf]
  %v51 = vld [vmem:[%s1 + $0xdc] sm:$0xff]
  %v52 = vld [vmem:[%s1 + $0xe4] sm:$0xff]
  %v53 = vld [vmem:[%s1 + $0xec] sm:$0xf]
  %v54 = vld [vmem:[%s1 + $0xf0] sm:$0xff]
  %v55 = vld [vmem:[%s1 + $0xf8] sm:$0xff]
  %v56 = vld [vmem:[%s1 + $0x100] sm:$0xf]
  %v57 = vld [vmem:[%s1 + $0x104] sm:$0xff]
  %v58 = vld [vmem:[%s1 + $0x10c] sm:$0xff]
  %v59 = vld [vmem:[%s1 + $0x114] sm:$0xf]
  %v60 = vld [vmem:[%s1 + $0x118] sm:$0xff]
  %v61 = vld [vmem:[%s1 + $0x120] sm:$0xff]
  %v62 = vld [vmem:[%s1 + $0x128] sm:$0xf]
  %v63 = vld [vmem:[%s1 + $0x12c] sm:$0xff]
  %v64 = vld [vmem:[%s1 + $0x134] sm:$0xff]
  %v65 = vld [vmem:[%s1 + $0x13c] sm:$0xf]
  %v66 = vld [vmem:[%s1 + $0x140] sm:$0xff]
  %v67 = vld [vmem:[%s1 + $0x148] sm:$0xff]
  %v68 = vld [vmem:[%s1 + $0x150] sm:$0xf]
  %v69 = vld [vmem:[%s1 + $0x154] sm:$0xff]
  %v70 = vld [vmem:[%s1 + $0x15c] sm:$0xff]
  %v71 = vld [vmem:[%s1 + $0x164] sm:$0xf]
  %v72 = vld [vmem:[%s1 + $0x168] sm:$0xff]
  %v73 = vld [vmem:[%s1 + $0x170] sm:$0xff]
  %v74 = vld [vmem:[%s1 + $0x178] sm:$0xf]
  %v75 = vld [vmem:[%s1 + $0x17c] sm:$0xff]
  %v76 = vld [vmem:[%s1 + $0x184] sm:$0xff]
  %v77 = vld [vmem:[%s1 + $0x18c] sm:$0xf]
  %v78 = vld [vmem:[%s1 + $0x190] sm:$0xff]
  %v79 = vld [vmem:[%s1 + $0x198] sm:$0xff]
  %v80 = vld [vmem:[%s1 + $0x1a0] sm:$0xf]
  %v81 = vld [vmem:[%s1 + $0x1a4] sm:$0xff]
  %v82 = vld [vmem:[%s1 + $0x1ac] sm:$0xff]
  %v83 = vld [vmem:[%s1 + $0x1b4] sm:$0xf]
  %v84 = vld [vmem:[%s1 + $0x1b8] sm:$0xff]
  %v85 = vld [vmem:[%s1 + $0x1c0] sm:$0xff]
  %v86 = vld [vmem:[%s1 + $0x1c8] sm:$0xf]
  %v87 = vld [vmem:[%s1 + $0x1cc] sm:$0xff]
  %v88 = vld [vmem:[%s1 + $0x1d4] sm:$0xff]
  %v89 = vld [vmem:[%s1 + $0x1dc] sm:$0xf]
  %v90 = vld [vmem:[%s1 + $0x1e0] sm:$0xff]
  %v91 = vld [vmem:[%s1 + $0x1e8] sm:$0xff]
  %v92 = vld [vmem:[%s1 + $0x1f0] sm:$0xf]
  %v93 = vld [vmem:[%s1 + $0x1f4] sm:$0xff]
  %v94 = vld [vmem:[%s1 + $0x1fc] sm:$0xff]
  %v95 = vld [vmem:[%s1 + $0x204] sm:$0xf]
  %v96 = vld [vmem:[%s1 + $0x208] sm:$0xff]
  %v97 = vld [vmem:[%s1 + $0x210] sm:$0xff]
  %v98 = vld [vmem:[%s1 + $0x218] sm:$0xf]
  %v99 = vld [vmem:[%s1 + $0x21c] sm:$0xff]
  %v100 = vld [vmem:[%s1 + $0x224] sm:$0xff]
  %v101 = vld [vmem:[%s1 + $0x22c] sm:$0xf]
  %v102 = vld [vmem:[%s1 + $0x230] sm:$0xff]
  %v103 = vld [vmem:[%s1 + $0x238] sm:$0xff]
  %v104 = vld [vmem:[%s1 + $0x240] sm:$0xf]
  %v105 = vld [vmem:[%s1 + $0x244] sm:$0xff]
  %v106 = vld [vmem:[%s1 + $0x24c] sm:$0xff]
  %v107 = vld [vmem:[%s1 + $0x254] sm:$0xf]
  %v108 = vld [vmem:[%s1 + $0x258] sm:$0xff]
  %v109 = vld [vmem:[%s1 + $0x260] sm:$0xff]
  %v110 = vld [vmem:[%s1 + $0x268] sm:$0xf]
  %v111 = vld [vmem:[%s1 + $0x26c] sm:$0xff]
  %v112 = vld [vmem:[%s1 + $0x274] sm:$0xff]
  %v113 = vld [vmem:[%s1 + $0x27c] sm:$0xf]
  %v114 = vld [vmem:[%s1 + $0x280] sm:$0xff]
  %v115 = vld [vmem:[%s1 + $0x288] sm:$0xff]
  %v116 = vld [vmem:[%s1 + $0x290] sm:$0xf]
  %v117 = vld [vmem:[%s1 + $0x294] sm:$0xff]
  %v118 = vld [vmem:[%s1 + $0x29c] sm:$0xff]
  %v119 = vld [vmem:[%s1 + $0x2a4] sm:$0xf]
  %v120 = vld [vmem:[%s1 + $0x2a8] sm:$0xff]
  %v121 = vld [vmem:[%s1 + $0x2b0] sm:$0xff]
  %v122 = vld [vmem:[%s1 + $0x2b8] sm:$0xf]
  %v123 = vld [vmem:[%s1 + $0x2bc] sm:$0xff]
  %v124 = vld [vmem:[%s1 + $0x2c4] sm:$0xff]
  %v125 = vld [vmem:[%s1 + $0x2cc] sm:$0xf]
  %v126 = vld [vmem:[%s1 + $0x2d0] sm:$0xff]
  %v127 = vld [vmem:[%s1 + $0x2d8] sm:$0xff]
  %v128 = vld [vmem:[%s1 + $0x2e0] sm:$0xf]
  %v129 = vld [vmem:[%s1 + $0x2e4] sm:$0xff]
  %v130 = vld [vmem:[%s1 + $0x2ec] sm:$0xff]
  %v131 = vld [vmem:[%s1 + $0x2f4] sm:$0xf]
  %v132 = vld [vmem:[%s1 + $0x2f8] sm:$0xff]
  %v133 = vld [vmem:[%s1 + $0x300] sm:$0xff]
  %v134 = vld [vmem:[%s1 + $0x308] sm:$0xf]
  %v135 = vld [vmem:[%s1 + $0x30c] sm:$0xff]
  %v136 = vld [vmem:[%s1 + $0x314] sm:$0xff]
  %v137 = vld [vmem:[%s1 + $0x31c] sm:$0xf]
  %v138 = vld [vmem:[%s1 + $0x320] sm:$0xff]
  %v139 = vld [vmem:[%s1 + $0x328] sm:$0xff]
  %v140 = vld [vmem:[%s1 + $0x330] sm:$0xf]
  %v141 = vld [vmem:[%s1 + $0x334] sm:$0xff]
  %v142 = vld [vmem:[%s1 + $0x33c] sm:$0xff]
  %v143 = vld [vmem:[%s1 + $0x344] sm:$0xf]
  %v144 = vld [vmem:[%s1 + $0x348] sm:$0xff]
  %v145 = vld [vmem:[%s1 + $0x350] sm:$0xff]
  %v146 = vld [vmem:[%s1 + $0x358] sm:$0xf]
  %v147 = vld [vmem:[%s1 + $0x35c] sm:$0xff]
  %v148 = vld [vmem:[%s1 + $0x364] sm:$0xff]
  %v149 = vld [vmem:[%s1 + $0x36c] sm:$0xf]
  %v150 = vld [vmem:[%s1 + $0x370] sm:$0xff]
  %v151 = vld [vmem:[%s1 + $0x378] sm:$0xff]
  %v152 = vld [vmem:[%s1 + $0x380] sm:$0xf]
  %v153 = vld [vmem:[%s1 + $0x384] sm:$0xff]
  %v154 = vld [vmem:[%s1 + $0x38c] sm:$0xff]
  %v155 = vld [vmem:[%s1 + $0x394] sm:$0xf]
  %v156 = vld [vmem:[%s1 + $0x398] sm:$0xff]
  %v157 = vld [vmem:[%s1 + $0x3a0] sm:$0xff]
  %v158 = vld [vmem:[%s1 + $0x3a8] sm:$0xf]
  %v159 = vld [vmem:[%s1 + $0x3ac] sm:$0xff]
  %v160 = vld [vmem:[%s1 + $0x3b4] sm:$0xff]
  %v161 = vld [vmem:[%s1 + $0x3bc] sm:$0xf]
  %v162 = vld [vmem:[%s1 + $0x3c0] sm:$0xff]
  %v163 = vld [vmem:[%s1 + $0x3c8] sm:$0xff]
  %v164 = vld [vmem:[%s1 + $0x3d0] sm:$0xf]
  %v165 = vld [vmem:[%s1 + $0x3d4] sm:$0xff]
  %v166 = vld [vmem:[%s1 + $0x3dc] sm:$0xff]
  %v167 = vld [vmem:[%s1 + $0x3e4] sm:$0xf]
  %v168 = vld [vmem:[%s1 + $0x3e8] sm:$0xff]
  %v169 = vld [vmem:[%s1 + $0x3f0] sm:$0xff]
  %v170 = vld [vmem:[%s1 + $0x3f8] sm:$0xf]
  %v171 = vld [vmem:[%s1 + $0x3fc] sm:$0xff]
  %v172 = vld [vmem:[%s1 + $0x404] sm:$0xff]
  %v173 = vld [vmem:[%s1 + $0x40c] sm:$0xf]
  %v174 = vld [vmem:[%s1 + $0x410] sm:$0xff]
  %v175 = vld [vmem:[%s1 + $0x418] sm:$0xff]
  %v176 = vld [vmem:[%s1 + $0x420] sm:$0xf]
  %v177 = vld [vmem:[%s1 + $0x424] sm:$0xff]
  %v178 = vld [vmem:[%s1 + $0x42c] sm:$0xff]
  %v179 = vld [vmem:[%s1 + $0x434] sm:$0xf]
  %v180 = vld [vmem:[%s1 + $0x438] sm:$0xff]
  %v181 = vld [vmem:[%s1 + $0x440] sm:$0xff]
  %v182 = vld [vmem:[%s1 + $0x448] sm:$0xf]
  %v183 = vld [vmem:[%s1 + $0x44c] sm:$0xff]
  %v184 = vld [vmem:[%s1 + $0x454] sm:$0xff]
  %v185 = vld [vmem:[%s1 + $0x45c] sm:$0xf]
  %v186 = vld [vmem:[%s1 + $0x460] sm:$0xff]
  %v187 = vld [vmem:[%s1 + $0x468] sm:$0xff]
  %v188 = vld [vmem:[%s1 + $0x470] sm:$0xf]
  %v189 = vld [vmem:[%s1 + $0x474] sm:$0xff]
  %v190 = vld [vmem:[%s1 + $0x47c] sm:$0xff]
  %v191 = vld [vmem:[%s1 + $0x484] sm:$0xf]
  %v192 = vld [vmem:[%s1 + $0x488] sm:$0xff]
  %v193 = vld [vmem:[%s1 + $0x490] sm:$0xff]
  %v194 = vld [vmem:[%s1 + $0x498] sm:$0xf]
  %v195 = vld [vmem:[%s1 + $0x49c] sm:$0x33]
  %v196 = vld [vmem:[%s1 + $0x4a4] sm:$0x33]
  %v197 = vld [vmem:[%s1 + $0x4ac] sm:$0x3]
  %v200 = vunpack.c.l.b16 %v16
  %v201 = vunpack.c.h.b16 %v16
  %v202 = vunpack.c.l.b16 %v17
  %v203 = vunpack.c.h.b16 %v17
  %v204 = vpack.c.b16 %v200, %v200
  %v205 = vpack.c.b16 %v201, %v201
  %v206 = vpack.c.b16 %v202, %v202
  %v207 = vpack.c.b16 %v203, %v203
  %v391 = vunpack.c.l.b16 %v18
  %v392 = vunpack.c.h.b16 %v18
  %v393 = vunpack.c.l.b16 %v19
  %v394 = vunpack.c.h.b16 %v19
  %v395 = vunpack.c.l.b16 %v20
  %v396 = vunpack.c.l.b16 %v21
  %v397 = vunpack.c.h.b16 %v21
  %v398 = vunpack.c.l.b16 %v22
  %v399 = vunpack.c.h.b16 %v22
  %v400 = vunpack.c.l.b16 %v23
  %v401 = vunpack.c.l.b16 %v24
  %v402 = vunpack.c.h.b16 %v24
  %v403 = vunpack.c.l.b16 %v25
  %v404 = vunpack.c.h.b16 %v25
  %v405 = vunpack.c.l.b16 %v26
  %v406 = vunpack.c.l.b16 %v27
  %v407 = vunpack.c.h.b16 %v27
  %v408 = vunpack.c.l.b16 %v28
  %v409 = vunpack.c.h.b16 %v28
  %v410 = vunpack.c.l.b16 %v29
  %v411 = vunpack.c.l.b16 %v30
  %v412 = vunpack.c.h.b16 %v30
  %v413 = vunpack.c.l.b16 %v31
  %v414 = vunpack.c.h.b16 %v31
  %v415 = vunpack.c.l.b16 %v32
  %v416 = vunpack.c.l.b16 %v33
  %v417 = vunpack.c.h.b16 %v33
  %v418 = vunpack.c.l.b16 %v34
  %v419 = vunpack.c.h.b16 %v34
  %v420 = vunpack.c.l.b16 %v35
  %v421 = vunpack.c.l.b16 %v36
  %v422 = vunpack.c.h.b16 %v36
  %v423 = vunpack.c.l.b16 %v37
  %v424 = vunpack.c.h.b16 %v37
  %v425 = vunpack.c.l.b16 %v38
  %v426 = vunpack.c.l.b16 %v39
  %v427 = vunpack.c.h.b16 %v39
  %v428 = vunpack.c.l.b16 %v40
  %v429 = vunpack.c.h.b16 %v40
  %v430 = vunpack.c.l.b16 %v41
  %v431 = vunpack.c.l.b16 %v42
  %v432 = vunpack.c.h.b16 %v42
  %v433 = vunpack.c.l.b16 %v43
  %v434 = vunpack.c.h.b16 %v43
  %v435 = vunpack.c.l.b16 %v44
  %v436 = vunpack.c.l.b16 %v45
  %v437 = vunpack.c.h.b16 %v45
  %v438 = vunpack.c.l.b16 %v46
  %v439 = vunpack.c.h.b16 %v46
  %v440 = vunpack.c.l.b16 %v47
  %v441 = vunpack.c.l.b16 %v48
  %v442 = vunpack.c.h.b16 %v48
  %v443 = vunpack.c.l.b16 %v49
  %v444 = vunpack.c.h.b16 %v49
  %v445 = vunpack.c.l.b16 %v50
  %v446 = vunpack.c.l.b16 %v51
  %v447 = vunpack.c.h.b16 %v51
  %v448 = vunpack.c.l.b16 %v52
  %v449 = vunpack.c.h.b16 %v52
  %v450 = vunpack.c.l.b16 %v53
  %v451 = vunpack.c.l.b16 %v54
  %v452 = vunpack.c.h.b16 %v54
  %v453 = vunpack.c.l.b16 %v55
  %v454 = vunpack.c.h.b16 %v55
  %v455 = vunpack.c.l.b16 %v56
  %v456 = vunpack.c.l.b16 %v57
  %v457 = vunpack.c.h.b16 %v57
  %v458 = vunpack.c.l.b16 %v58
  %v459 = vunpack.c.h.b16 %v58
  %v460 = vunpack.c.l.b16 %v59
  %v461 = vunpack.c.l.b16 %v60
  %v462 = vunpack.c.h.b16 %v60
  %v463 = vunpack.c.l.b16 %v61
  %v464 = vunpack.c.h.b16 %v61
  %v465 = vunpack.c.l.b16 %v62
  %v466 = vunpack.c.l.b16 %v63
  %v467 = vunpack.c.h.b16 %v63
  %v468 = vunpack.c.l.b16 %v64
  %v469 = vunpack.c.h.b16 %v64
  %v470 = vunpack.c.l.b16 %v65
  %v471 = vunpack.c.l.b16 %v66
  %v472 = vunpack.c.h.b16 %v66
  %v473 = vunpack.c.l.b16 %v67
  %v474 = vunpack.c.h.b16 %v67
  %v475 = vunpack.c.l.b16 %v68
  %v476 = vunpack.c.l.b16 %v69
  %v477 = vunpack.c.h.b16 %v69
  %v478 = vunpack.c.l.b16 %v70
  %v479 = vunpack.c.h.b16 %v70
  %v480 = vunpack.c.l.b16 %v71
  %v481 = vunpack.c.l.b16 %v72
  %v482 = vunpack.c.h.b16 %v72
  %v483 = vunpack.c.l.b16 %v73
  %v484 = vunpack.c.h.b16 %v73
  %v485 = vunpack.c.l.b16 %v74
  %v486 = vunpack.c.l.b16 %v75
  %v487 = vunpack.c.h.b16 %v75
  %v488 = vunpack.c.l.b16 %v76
  %v489 = vunpack.c.h.b16 %v76
  %v490 = vunpack.c.l.b16 %v77
  %v491 = vunpack.c.l.b16 %v78
  %v492 = vunpack.c.h.b16 %v78
  %v493 = vunpack.c.l.b16 %v79
  %v494 = vunpack.c.h.b16 %v79
  %v495 = vunpack.c.l.b16 %v80
  %v496 = vunpack.c.l.b16 %v81
  %v497 = vunpack.c.h.b16 %v81
  %v498 = vunpack.c.l.b16 %v82
  %v499 = vunpack.c.h.b16 %v82
  %v500 = vunpack.c.l.b16 %v83
  %v501 = vunpack.c.l.b16 %v84
  %v502 = vunpack.c.h.b16 %v84
  %v503 = vunpack.c.l.b16 %v85
  %v504 = vunpack.c.h.b16 %v85
  %v505 = vunpack.c.l.b16 %v86
  %v506 = vunpack.c.l.b16 %v87
  %v507 = vunpack.c.h.b16 %v87
  %v508 = vunpack.c.l.b16 %v88
  %v509 = vunpack.c.h.b16 %v88
  %v510 = vunpack.c.l.b16 %v89
  %v511 = vunpack.c.l.b16 %v90
  %v512 = vunpack.c.h.b16 %v90
  %v513 = vunpack.c.l.b16 %v91
  %v514 = vunpack.c.h.b16 %v91
  %v515 = vunpack.c.l.b16 %v92
  %v516 = vunpack.c.l.b16 %v93
  %v517 = vunpack.c.h.b16 %v93
  %v518 = vunpack.c.l.b16 %v94
  %v519 = vunpack.c.h.b16 %v94
  %v520 = vunpack.c.l.b16 %v95
  %v521 = vunpack.c.l.b16 %v96
  %v522 = vunpack.c.h.b16 %v96
  %v523 = vunpack.c.l.b16 %v97
  %v524 = vunpack.c.h.b16 %v97
  %v525 = vunpack.c.l.b16 %v98
  %v526 = vunpack.c.l.b16 %v99
  %v527 = vunpack.c.h.b16 %v99
  %v528 = vunpack.c.l.b16 %v100
  %v529 = vunpack.c.h.b16 %v100
  %v530 = vunpack.c.l.b16 %v101
  %v531 = vunpack.c.l.b16 %v102
  %v532 = vunpack.c.h.b16 %v102
  %v533 = vunpack.c.l.b16 %v103
  %v534 = vunpack.c.h.b16 %v103
  %v535 = vunpack.c.l.b16 %v104
  %v536 = vunpack.c.l.b16 %v105
  %v537 = vunpack.c.h.b16 %v105
  %v538 = vunpack.c.l.b16 %v106
  %v539 = vunpack.c.h.b16 %v106
  %v540 = vunpack.c.l.b16 %v107
  %v541 = vunpack.c.l.b16 %v108
  %v542 = vunpack.c.h.b16 %v108
  %v543 = vunpack.c.l.b16 %v109
  %v544 = vunpack.c.h.b16 %v109
  %v545 = vunpack.c.l.b16 %v110
  %v546 = vunpack.c.l.b16 %v111
  %v547 = vunpack.c.h.b16 %v111
  %v548 = vunpack.c.l.b16 %v112
  %v549 = vunpack.c.h.b16 %v112
  %v550 = vunpack.c.l.b16 %v113
  %v551 = vunpack.c.l.b16 %v114
  %v552 = vunpack.c.h.b16 %v114
  %v553 = vunpack.c.l.b16 %v115
  %v554 = vunpack.c.h.b16 %v115
  %v555 = vunpack.c.l.b16 %v116
  %v556 = vunpack.c.l.b16 %v117
  %v557 = vunpack.c.h.b16 %v117
  %v558 = vunpack.c.l.b16 %v118
  %v559 = vunpack.c.h.b16 %v118
  %v560 = vunpack.c.l.b16 %v119
  %v561 = vunpack.c.l.b16 %v120
  %v562 = vunpack.c.h.b16 %v120
  %v563 = vunpack.c.l.b16 %v121
  %v564 = vunpack.c.h.b16 %v121
  %v565 = vunpack.c.l.b16 %v122
  %v566 = vunpack.c.l.b16 %v123
  %v567 = vunpack.c.h.b16 %v123
  %v568 = vunpack.c.l.b16 %v124
  %v569 = vunpack.c.h.b16 %v124
  %v570 = vunpack.c.l.b16 %v125
  %v571 = vunpack.c.l.b16 %v126
  %v572 = vunpack.c.h.b16 %v126
  %v573 = vunpack.c.l.b16 %v127
  %v574 = vunpack.c.h.b16 %v127
  %v575 = vunpack.c.l.b16 %v128
  %v576 = vunpack.c.l.b16 %v129
  %v577 = vunpack.c.h.b16 %v129
  %v578 = vunpack.c.l.b16 %v130
  %v579 = vunpack.c.h.b16 %v130
  %v580 = vunpack.c.l.b16 %v131
  %v581 = vunpack.c.l.b16 %v132
  %v582 = vunpack.c.h.b16 %v132
  %v583 = vunpack.c.l.b16 %v133
  %v584 = vunpack.c.h.b16 %v133
  %v585 = vunpack.c.l.b16 %v134
  %v586 = vunpack.c.l.b16 %v135
  %v587 = vunpack.c.h.b16 %v135
  %v588 = vunpack.c.l.b16 %v136
  %v589 = vunpack.c.h.b16 %v136
  %v590 = vunpack.c.l.b16 %v137
  %v591 = vunpack.c.l.b16 %v138
  %v592 = vunpack.c.h.b16 %v138
  %v593 = vunpack.c.l.b16 %v139
  %v594 = vunpack.c.h.b16 %v139
  %v595 = vunpack.c.l.b16 %v140
  %v596 = vunpack.c.l.b16 %v141
  %v597 = vunpack.c.h.b16 %v141
  %v598 = vunpack.c.l.b16 %v142
  %v599 = vunpack.c.h.b16 %v142
  %v600 = vunpack.c.l.b16 %v143
  %v601 = vunpack.c.l.b16 %v144
  %v602 = vunpack.c.h.b16 %v144
  %v603 = vunpack.c.l.b16 %v145
  %v604 = vunpack.c.h.b16 %v145
  %v605 = vunpack.c.l.b16 %v146
  %v606 = vunpack.c.l.b16 %v147
  %v607 = vunpack.c.h.b16 %v147
  %v608 = vunpack.c.l.b16 %v148
  %v609 = vunpack.c.h.b16 %v148
  %v610 = vunpack.c.l.b16 %v149
  %v611 = vunpack.c.l.b16 %v150
  %v612 = vunpack.c.h.b16 %v150
  %v613 = vunpack.c.l.b16 %v151
  %v614 = vunpack.c.h.b16 %v151
  %v615 = vunpack.c.l.b16 %v152
  %v616 = vunpack.c.l.b16 %v153
  %v617 = vunpack.c.h.b16 %v153
  %v618 = vunpack.c.l.b16 %v154
  %v619 = vunpack.c.h.b16 %v154
  %v620 = vunpack.c.l.b16 %v155
  %v621 = vunpack.c.l.b16 %v156
  %v622 = vunpack.c.h.b16 %v156
  %v623 = vunpack.c.l.b16 %v157
  %v624 = vunpack.c.h.b16 %v157
  %v625 = vunpack.c.l.b16 %v158
  %v626 = vunpack.c.l.b16 %v159
  %v627 = vunpack.c.h.b16 %v159
  %v628 = vunpack.c.l.b16 %v160
  %v629 = vunpack.c.h.b16 %v160
  %v630 = vunpack.c.l.b16 %v161
  %v631 = vunpack.c.l.b16 %v162
  %v632 = vunpack.c.h.b16 %v162
  %v633 = vunpack.c.l.b16 %v163
  %v634 = vunpack.c.h.b16 %v163
  %v635 = vunpack.c.l.b16 %v164
  %v636 = vunpack.c.l.b16 %v165
  %v637 = vunpack.c.h.b16 %v165
  %v638 = vunpack.c.l.b16 %v166
  %v639 = vunpack.c.h.b16 %v166
  %v640 = vunpack.c.l.b16 %v167
  %v641 = vunpack.c.l.b16 %v168
  %v642 = vunpack.c.h.b16 %v168
  %v643 = vunpack.c.l.b16 %v169
  %v644 = vunpack.c.h.b16 %v169
  %v645 = vunpack.c.l.b16 %v170
  %v646 = vunpack.c.l.b16 %v171
  %v647 = vunpack.c.h.b16 %v171
  %v648 = vunpack.c.l.b16 %v172
  %v649 = vunpack.c.h.b16 %v172
  %v650 = vunpack.c.l.b16 %v173
  %v651 = vunpack.c.l.b16 %v174
  %v652 = vunpack.c.h.b16 %v174
  %v653 = vunpack.c.l.b16 %v175
  %v654 = vunpack.c.h.b16 %v175
  %v655 = vunpack.c.l.b16 %v176
  %v656 = vunpack.c.l.b16 %v177
  %v657 = vunpack.c.h.b16 %v177
  %v658 = vunpack.c.l.b16 %v178
  %v659 = vunpack.c.h.b16 %v178
  %v660 = vunpack.c.l.b16 %v179
  %v661 = vunpack.c.l.b16 %v180
  %v662 = vunpack.c.h.b16 %v180
  %v663 = vunpack.c.l.b16 %v181
  %v664 = vunpack.c.h.b16 %v181
  %v665 = vunpack.c.l.b16 %v182
  %v666 = vunpack.c.l.b16 %v183
  %v667 = vunpack.c.h.b16 %v183
  %v668 = vunpack.c.l.b16 %v184
  %v669 = vunpack.c.h.b16 %v184
  %v670 = vunpack.c.l.b16 %v185
  %v671 = vunpack.c.l.b16 %v186
  %v672 = vunpack.c.h.b16 %v186
  %v673 = vunpack.c.l.b16 %v187
  %v674 = vunpack.c.h.b16 %v187
  %v675 = vunpack.c.l.b16 %v188
  %v676 = vunpack.c.l.b16 %v189
  %v677 = vunpack.c.h.b16 %v189
  %v678 = vunpack.c.l.b16 %v190
  %v679 = vunpack.c.h.b16 %v190
  %v680 = vunpack.c.l.b16 %v191
  %v681 = vunpack.c.l.b16 %v192
  %v682 = vunpack.c.h.b16 %v192
  %v683 = vunpack.c.l.b16 %v193
  %v684 = vunpack.c.h.b16 %v193
  %v685 = vunpack.c.l.b16 %v194
  %v686 = vunpack.c.l.b16 %v195
  %v687 = vunpack.c.h.b16 %v195
  %v688 = vunpack.c.l.b16 %v196
  %v689 = vunpack.c.h.b16 %v196
  %v690 = vunpack.c.l.b16 %v197
  %v691 = vpack.c.b16 %v396, %v391
  %v692 = vpack.c.b16 %v397, %v392
  %v693 = vpack.c.b16 %v398, %v393
  %v694 = vpack.c.b16 %v399, %v394
  %v695 = vpack.c.b16 %v400, %v395
  %v696 = vpack.c.b16 %v406, %v401
  %v697 = vpack.c.b16 %v407, %v402
  %v698 = vpack.c.b16 %v408, %v403
  %v699 = vpack.c.b16 %v409, %v404
  %v700 = vpack.c.b16 %v410, %v405
  %v701 = vpack.c.b16 %v416, %v411
  %v702 = vpack.c.b16 %v417, %v412
  %v703 = vpack.c.b16 %v418, %v413
  %v704 = vpack.c.b16 %v419, %v414
  %v705 = vpack.c.b16 %v420, %v415
  %v706 = vpack.c.b16 %v426, %v421
  %v707 = vpack.c.b16 %v427, %v422
  %v708 = vpack.c.b16 %v428, %v423
  %v709 = vpack.c.b16 %v429, %v424
  %v710 = vpack.c.b16 %v430, %v425
  %v711 = vpack.c.b16 %v436, %v431
  %v712 = vpack.c.b16 %v437, %v432
  %v713 = vpack.c.b16 %v438, %v433
  %v714 = vpack.c.b16 %v439, %v434
  %v715 = vpack.c.b16 %v440, %v435
  %v716 = vpack.c.b16 %v446, %v441
  %v717 = vpack.c.b16 %v447, %v442
  %v718 = vpack.c.b16 %v448, %v443
  %v719 = vpack.c.b16 %v449, %v444
  %v720 = vpack.c.b16 %v450, %v445
  %v721 = vpack.c.b16 %v456, %v451
  %v722 = vpack.c.b16 %v457, %v452
  %v723 = vpack.c.b16 %v458, %v453
  %v724 = vpack.c.b16 %v459, %v454
  %v725 = vpack.c.b16 %v460, %v455
  %v726 = vpack.c.b16 %v466, %v461
  %v727 = vpack.c.b16 %v467, %v462
  %v728 = vpack.c.b16 %v468, %v463
  %v729 = vpack.c.b16 %v469, %v464
  %v730 = vpack.c.b16 %v470, %v465
  %v731 = vpack.c.b16 %v476, %v471
  %v732 = vpack.c.b16 %v477, %v472
  %v733 = vpack.c.b16 %v478, %v473
  %v734 = vpack.c.b16 %v479, %v474
  %v735 = vpack.c.b16 %v480, %v475
  %v736 = vpack.c.b16 %v486, %v481
  %v737 = vpack.c.b16 %v487, %v482
  %v738 = vpack.c.b16 %v488, %v483
  %v739 = vpack.c.b16 %v489, %v484
  %v740 = vpack.c.b16 %v490, %v485
  %v741 = vpack.c.b16 %v496, %v491
  %v742 = vpack.c.b16 %v497, %v492
  %v743 = vpack.c.b16 %v498, %v493
  %v744 = vpack.c.b16 %v499, %v494
  %v745 = vpack.c.b16 %v500, %v495
  %v746 = vpack.c.b16 %v506, %v501
  %v747 = vpack.c.b16 %v507, %v502
  %v748 = vpack.c.b16 %v508, %v503
  %v749 = vpack.c.b16 %v509, %v504
  %v750 = vpack.c.b16 %v510, %v505
  %v751 = vpack.c.b16 %v516, %v511
  %v752 = vpack.c.b16 %v517, %v512
  %v753 = vpack.c.b16 %v518, %v513
  %v754 = vpack.c.b16 %v519, %v514
  %v755 = vpack.c.b16 %v520, %v515
  %v756 = vpack.c.b16 %v526, %v521
  %v757 = vpack.c.b16 %v527, %v522
  %v758 = vpack.c.b16 %v528, %v523
  %v759 = vpack.c.b16 %v529, %v524
  %v760 = vpack.c.b16 %v530, %v525
  %v761 = vpack.c.b16 %v536, %v531
  %v762 = vpack.c.b16 %v537, %v532
  %v763 = vpack.c.b16 %v538, %v533
  %v764 = vpack.c.b16 %v539, %v534
  %v765 = vpack.c.b16 %v540, %v535
  %v766 = vpack.c.b16 %v546, %v541
  %v767 = vpack.c.b16 %v547, %v542
  %v768 = vpack.c.b16 %v548, %v543
  %v769 = vpack.c.b16 %v549, %v544
  %v770 = vpack.c.b16 %v550, %v545
  %v771 = vpack.c.b16 %v556, %v551
  %v772 = vpack.c.b16 %v557, %v552
  %v773 = vpack.c.b16 %v558, %v553
  %v774 = vpack.c.b16 %v559, %v554
  %v775 = vpack.c.b16 %v560, %v555
  %v776 = vpack.c.b16 %v566, %v561
  %v777 = vpack.c.b16 %v567, %v562
  %v778 = vpack.c.b16 %v568, %v563
  %v779 = vpack.c.b16 %v569, %v564
  %v780 = vpack.c.b16 %v570, %v565
  %v781 = vpack.c.b16 %v576, %v571
  %v782 = vpack.c.b16 %v577, %v572
  %v783 = vpack.c.b16 %v578, %v573
  %v784 = vpack.c.b16 %v579, %v574
  %v785 = vpack.c.b16 %v580, %v575
  %v786 = vpack.c.b16 %v586, %v581
  %v787 = vpack.c.b16 %v587, %v582
  %v788 = vpack.c.b16 %v588, %v583
  %v789 = vpack.c.b16 %v589, %v584
  %v790 = vpack.c.b16 %v590, %v585
  %v791 = vpack.c.b16 %v596, %v591
  %v792 = vpack.c.b16 %v597, %v592
  %v793 = vpack.c.b16 %v598, %v593
  %v794 = vpack.c.b16 %v599, %v594
  %v795 = vpack.c.b16 %v600, %v595
  %v796 = vpack.c.b16 %v606, %v601
  %v797 = vpack.c.b16 %v607, %v602
  %v798 = vpack.c.b16 %v608, %v603
  %v799 = vpack.c.b16 %v609, %v604
  %v800 = vpack.c.b16 %v610, %v605
  %v801 = vpack.c.b16 %v616, %v611
  %v802 = vpack.c.b16 %v617, %v612
  %v803 = vpack.c.b16 %v618, %v613
  %v804 = vpack.c.b16 %v619, %v614
  %v805 = vpack.c.b16 %v620, %v615
  %v806 = vpack.c.b16 %v626, %v621
  %v807 = vpack.c.b16 %v627, %v622
  %v808 = vpack.c.b16 %v628, %v623
  %v809 = vpack.c.b16 %v629, %v624
  %v810 = vpack.c.b16 %v630, %v625
  %v811 = vpack.c.b16 %v636, %v631
  %v812 = vpack.c.b16 %v637, %v632
  %v813 = vpack.c.b16 %v638, %v633
  %v814 = vpack.c.b16 %v639, %v634
  %v815 = vpack.c.b16 %v640, %v635
  %v816 = vpack.c.b16 %v646, %v641
  %v817 = vpack.c.b16 %v647, %v642
  %v818 = vpack.c.b16 %v648, %v643
  %v819 = vpack.c.b16 %v649, %v644
  %v820 = vpack.c.b16 %v650, %v645
  %v821 = vpack.c.b16 %v656, %v651
  %v822 = vpack.c.b16 %v657, %v652
  %v823 = vpack.c.b16 %v658, %v653
  %v824 = vpack.c.b16 %v659, %v654
  %v825 = vpack.c.b16 %v660, %v655
  %v826 = vpack.c.b16 %v666, %v661
  %v827 = vpack.c.b16 %v667, %v662
  %v828 = vpack.c.b16 %v668, %v663
  %v829 = vpack.c.b16 %v669, %v664
  %v830 = vpack.c.b16 %v670, %v665
  %v831 = vpack.c.b16 %v676, %v671
  %v832 = vpack.c.b16 %v677, %v672
  %v833 = vpack.c.b16 %v678, %v673
  %v834 = vpack.c.b16 %v679, %v674
  %v835 = vpack.c.b16 %v680, %v675
  %v836 = vpack.c.b16 %v686, %v681
  %v837 = vpack.c.b16 %v687, %v682
  %v838 = vpack.c.b16 %v688, %v683
  %v839 = vpack.c.b16 %v689, %v684
  %v840 = vpack.c.b16 %v690, %v685
  %vm986 = vcmask 744448
  %v988 = vsel %vm986, %v207, 0
  %vm990 = vcmask 1044480
  %vm991 = vcmask 1045504
  %v992 = vsel %vm990, 4294967295, 65535
  %v993 = vsel %vm991, %v992, 0
  %v995 = vand.u32 %v836, %v993
  %v998 = vand.u32 %v837, %v993
  %v1001 = vand.u32 %v838, %v993
  %v1004 = vand.u32 %v839, %v993
  %v1007 = vand.u32 %v840, %v993
  %1009 = vmatprep.subr.bf16.mxu0 %v727
  %1010 = vmatpush1.bf16.msra.mxu0 %v726
  %1011 = vmatprep.subr.bf16.mxu0 %v722
  %1012 = vmatpush1.bf16.msra.mxu0 %v721
  %1013 = vmatprep.subr.bf16.mxu0 %v717
  %1014 = vmatpush1.bf16.msra.mxu0 %v716
  %1015 = vmatprep.subr.bf16.mxu0 %v712
  %1016 = vmatpush1.bf16.msra.mxu0 %v711
  %1017 = vmatprep.subr.bf16.mxu0 %v707
  %1018 = vmatpush1.bf16.msra.mxu0 %v706
  %1019 = vmatprep.subr.bf16.mxu0 %v702
  %1020 = vmatpush1.bf16.msra.mxu0 %v701
  %1021 = vmatprep.subr.bf16.mxu0 %v697
  %1022 = vmatpush1.bf16.msra.mxu0 %v696
  %1023 = vmatprep.subr.bf16.mxu0 %v692
  %1024 = vmatpush1.bf16.msra.mxu0 %v691
  %1025 = vmatprep.subr.bf16.mxu0 %v767
  %1026 = vmatpush2.bf16.msra.mxu0 %v766
  %1027 = vmatprep.subr.bf16.mxu0 %v762
  %1028 = vmatpush2.bf16.msra.mxu0 %v761
  %1029 = vmatprep.subr.bf16.mxu0 %v757
  %1030 = vmatpush2.bf16.msra.mxu0 %v756
  %1031 = vmatprep.subr.bf16.mxu0 %v752
  %1032 = vmatpush2.bf16.msra.mxu0 %v751
  %1033 = vmatprep.subr.bf16.mxu0 %v747
  %1034 = vmatpush2.bf16.msra.mxu0 %v746
  %1035 = vmatprep.subr.bf16.mxu0 %v742
  %1036 = vmatpush2.bf16.msra.mxu0 %v741
  %1037 = vmatprep.subr.bf16.mxu0 %v737
  %1038 = vmatpush2.bf16.msra.mxu0 %v736
  %1039 = vmatprep.subr.bf16.mxu0 %v732
  %1040 = vmatpush2.bf16.msra.mxu0 %v731
  %1041 = vmatprep.mubr.bf16.mxu0 %v205
  %1042 = vmatmul.mubr.bf16.gmra.mxu0 %v204
  %v1043 = vpop.f32.mrf.mxu0
  %v1044 = vadd.f32 0.0, %v1043
  %v1045 = vpop.f32.mrf.mxu0
  %v1046 = vadd.f32 0.0, %v1045
  %v1047 = vpop.f32.mrf.mxu0
  %v1048 = vpop.f32.mrf.mxu0
  %1049 = vdwg.mxu0
  %1050 = vmatprep.subr.bf16.mxu0 %v807
  %1051 = vmatpush1.bf16.msra.mxu0 %v806
  %1052 = vmatprep.subr.bf16.mxu0 %v802
  %1053 = vmatpush1.bf16.msra.mxu0 %v801
  %1054 = vmatprep.subr.bf16.mxu0 %v797
  %1055 = vmatpush1.bf16.msra.mxu0 %v796
  %1056 = vmatprep.subr.bf16.mxu0 %v792
  %1057 = vmatpush1.bf16.msra.mxu0 %v791
  %1058 = vmatprep.subr.bf16.mxu0 %v787
  %1059 = vmatpush1.bf16.msra.mxu0 %v786
  %1060 = vmatprep.subr.bf16.mxu0 %v782
  %1061 = vmatpush1.bf16.msra.mxu0 %v781
  %1062 = vmatprep.subr.bf16.mxu0 %v777
  %1063 = vmatpush1.bf16.msra.mxu0 %v776
  %1064 = vmatprep.subr.bf16.mxu0 %v772
  %1065 = vmatpush1.bf16.msra.mxu0 %v771
  %1066 = vmatprep.subr.bf16.mxu0 0
  %1067 = vmatpush2.bf16.msra.mxu0 0
  %1068 = vmatprep.subr.bf16.mxu0 0
  %1069 = vmatpush2.bf16.msra.mxu0 0
  %1070 = vmatprep.subr.bf16.mxu0 %v998
  %1071 = vmatpush2.bf16.msra.mxu0 %v995
  %1072 = vmatprep.subr.bf16.mxu0 %v832
  %1073 = vmatpush2.bf16.msra.mxu0 %v831
  %1074 = vmatprep.subr.bf16.mxu0 %v827
  %1075 = vmatpush2.bf16.msra.mxu0 %v826
  %1076 = vmatprep.subr.bf16.mxu0 %v822
  %1077 = vmatpush2.bf16.msra.mxu0 %v821
  %1078 = vmatprep.subr.bf16.mxu0 %v817
  %1079 = vmatpush2.bf16.msra.mxu0 %v816
  %1080 = vmatprep.subr.bf16.mxu0 %v812
  %1081 = vmatpush2.bf16.msra.mxu0 %v811
  %1082 = vmatprep.mubr.bf16.mxu0 %v988
  %1083 = vmatmul.mubr.bf16.gmra.mxu0 %v206
  %v1084 = vpop.f32.mrf.mxu0
  %v1085 = vadd.f32 %v1044, %v1084
  %v1086 = vpop.f32.mrf.mxu0
  %v1087 = vadd.f32 %v1046, %v1086
  %v1088 = vpop.f32.mrf.mxu0
  %v1089 = vpop.f32.mrf.mxu0
  %1090 = vdwg.mxu0
  %1091 = vmatprep.subr.bf16.mxu0 %v729
  %1092 = vmatpush1.bf16.msra.mxu0 %v728
  %1093 = vmatprep.subr.bf16.mxu0 %v724
  %1094 = vmatpush1.bf16.msra.mxu0 %v723
  %1095 = vmatprep.subr.bf16.mxu0 %v719
  %1096 = vmatpush1.bf16.msra.mxu0 %v718
  %1097 = vmatprep.subr.bf16.mxu0 %v714
  %1098 = vmatpush1.bf16.msra.mxu0 %v713
  %1099 = vmatprep.subr.bf16.mxu0 %v709
  %1100 = vmatpush1.bf16.msra.mxu0 %v708
  %1101 = vmatprep.subr.bf16.mxu0 %v704
  %1102 = vmatpush1.bf16.msra.mxu0 %v703
  %1103 = vmatprep.subr.bf16.mxu0 %v699
  %1104 = vmatpush1.bf16.msra.mxu0 %v698
  %1105 = vmatprep.subr.bf16.mxu0 %v694
  %1106 = vmatpush1.bf16.msra.mxu0 %v693
  %1107 = vmatprep.subr.bf16.mxu0 %v769
  %1108 = vmatpush2.bf16.msra.mxu0 %v768
  %1109 = vmatprep.subr.bf16.mxu0 %v764
  %1110 = vmatpush2.bf16.msra.mxu0 %v763
  %1111 = vmatprep.subr.bf16.mxu0 %v759
  %1112 = vmatpush2.bf16.msra.mxu0 %v758
  %1113 = vmatprep.subr.bf16.mxu0 %v754
  %1114 = vmatpush2.bf16.msra.mxu0 %v753
  %1115 = vmatprep.subr.bf16.mxu0 %v749
  %1116 = vmatpush2.bf16.msra.mxu0 %v748
  %1117 = vmatprep.subr.bf16.mxu0 %v744
  %1118 = vmatpush2.bf16.msra.mxu0 %v743
  %1119 = vmatprep.subr.bf16.mxu0 %v739
  %1120 = vmatpush2.bf16.msra.mxu0 %v738
  %1121 = vmatprep.subr.bf16.mxu0 %v734
  %1122 = vmatpush2.bf16.msra.mxu0 %v733
  %1123 = vmatprep.mubr.bf16.mxu0 %v205
  %1124 = vmatmul.mubr.bf16.gmra.mxu0 %v204
  %v1125 = vpop.f32.mrf.mxu0
  %v1126 = vadd.f32 0.0, %v1125
  %v1127 = vpop.f32.mrf.mxu0
  %v1128 = vadd.f32 0.0, %v1127
  %v1129 = vpop.f32.mrf.mxu0
  %v1130 = vpop.f32.mrf.mxu0
  %1131 = vdwg.mxu0
  %1132 = vmatprep.subr.bf16.mxu0 %v809
  %1133 = vmatpush1.bf16.msra.mxu0 %v808
  %1134 = vmatprep.subr.bf16.mxu0 %v804
  %1135 = vmatpush1.bf16.msra.mxu0 %v803
  %1136 = vmatprep.subr.bf16.mxu0 %v799
  %1137 = vmatpush1.bf16.msra.mxu0 %v798
  %1138 = vmatprep.subr.bf16.mxu0 %v794
  %1139 = vmatpush1.bf16.msra.mxu0 %v793
  %1140 = vmatprep.subr.bf16.mxu0 %v789
  %1141 = vmatpush1.bf16.msra.mxu0 %v788
  %1142 = vmatprep.subr.bf16.mxu0 %v784
  %1143 = vmatpush1.bf16.msra.mxu0 %v783
  %1144 = vmatprep.subr.bf16.mxu0 %v779
  %1145 = vmatpush1.bf16.msra.mxu0 %v778
  %1146 = vmatprep.subr.bf16.mxu0 %v774
  %1147 = vmatpush1.bf16.msra.mxu0 %v773
  %1148 = vmatprep.subr.bf16.mxu0 0
  %1149 = vmatpush2.bf16.msra.mxu0 0
  %1150 = vmatprep.subr.bf16.mxu0 0
  %1151 = vmatpush2.bf16.msra.mxu0 0
  %1152 = vmatprep.subr.bf16.mxu0 %v1004
  %1153 = vmatpush2.bf16.msra.mxu0 %v1001
  %1154 = vmatprep.subr.bf16.mxu0 %v834
  %1155 = vmatpush2.bf16.msra.mxu0 %v833
  %1156 = vmatprep.subr.bf16.mxu0 %v829
  %1157 = vmatpush2.bf16.msra.mxu0 %v828
  %1158 = vmatprep.subr.bf16.mxu0 %v824
  %1159 = vmatpush2.bf16.msra.mxu0 %v823
  %1160 = vmatprep.subr.bf16.mxu0 %v819
  %1161 = vmatpush2.bf16.msra.mxu0 %v818
  %1162 = vmatprep.subr.bf16.mxu0 %v814
  %1163 = vmatpush2.bf16.msra.mxu0 %v813
  %1164 = vmatprep.mubr.bf16.mxu0 %v988
  %1165 = vmatmul.mubr.bf16.gmra.mxu0 %v206
  %v1166 = vpop.f32.mrf.mxu0
  %v1167 = vadd.f32 %v1126, %v1166
  %v1168 = vpop.f32.mrf.mxu0
  %v1169 = vadd.f32 %v1128, %v1168
  %v1170 = vpop.f32.mrf.mxu0
  %v1171 = vpop.f32.mrf.mxu0
  %1172 = vdwg.mxu0
  %1173 = vmatprep.subr.bf16.mxu0 0
  %1174 = vmatpush1.bf16.msra.mxu0 %v730
  %1175 = vmatprep.subr.bf16.mxu0 0
  %1176 = vmatpush1.bf16.msra.mxu0 %v725
  %1177 = vmatprep.subr.bf16.mxu0 0
  %1178 = vmatpush1.bf16.msra.mxu0 %v720
  %1179 = vmatprep.subr.bf16.mxu0 0
  %1180 = vmatpush1.bf16.msra.mxu0 %v715
  %1181 = vmatprep.subr.bf16.mxu0 0
  %1182 = vmatpush1.bf16.msra.mxu0 %v710
  %1183 = vmatprep.subr.bf16.mxu0 0
  %1184 = vmatpush1.bf16.msra.mxu0 %v705
  %1185 = vmatprep.subr.bf16.mxu0 0
  %1186 = vmatpush1.bf16.msra.mxu0 %v700
  %1187 = vmatprep.subr.bf16.mxu0 0
  %1188 = vmatpush1.bf16.msra.mxu0 %v695
  %1189 = vmatprep.subr.bf16.mxu0 0
  %1190 = vmatpush2.bf16.msra.mxu0 %v770
  %1191 = vmatprep.subr.bf16.mxu0 0
  %1192 = vmatpush2.bf16.msra.mxu0 %v765
  %1193 = vmatprep.subr.bf16.mxu0 0
  %1194 = vmatpush2.bf16.msra.mxu0 %v760
  %1195 = vmatprep.subr.bf16.mxu0 0
  %1196 = vmatpush2.bf16.msra.mxu0 %v755
  %1197 = vmatprep.subr.bf16.mxu0 0
  %1198 = vmatpush2.bf16.msra.mxu0 %v750
  %1199 = vmatprep.subr.bf16.mxu0 0
  %1200 = vmatpush2.bf16.msra.mxu0 %v745
  %1201 = vmatprep.subr.bf16.mxu0 0
  %1202 = vmatpush2.bf16.msra.mxu0 %v740
  %1203 = vmatprep.subr.bf16.mxu0 0
  %1204 = vmatpush2.bf16.msra.mxu0 %v735
  %1205 = vmatprep.mubr.bf16.mxu0 %v205
  %1206 = vmatmul.mubr.bf16.gmra.mxu0 %v204
  %v1207 = vpop.f32.mrf.mxu0
  %v1208 = vadd.f32 0.0, %v1207
  %v1209 = vpop.f32.mrf.mxu0
  %v1210 = vpop.f32.mrf.mxu0
  %v1211 = vpop.f32.mrf.mxu0
  %1212 = vdwg.mxu0
  %1213 = vmatprep.subr.bf16.mxu0 0
  %1214 = vmatpush1.bf16.msra.mxu0 %v810
  %1215 = vmatprep.subr.bf16.mxu0 0
  %1216 = vmatpush1.bf16.msra.mxu0 %v805
  %1217 = vmatprep.subr.bf16.mxu0 0
  %1218 = vmatpush1.bf16.msra.mxu0 %v800
  %1219 = vmatprep.subr.bf16.mxu0 0
  %1220 = vmatpush1.bf16.msra.mxu0 %v795
  %1221 = vmatprep.subr.bf16.mxu0 0
  %1222 = vmatpush1.bf16.msra.mxu0 %v790
  %1223 = vmatprep.subr.bf16.mxu0 0
  %1224 = vmatpush1.bf16.msra.mxu0 %v785
  %1225 = vmatprep.subr.bf16.mxu0 0
  %1226 = vmatpush1.bf16.msra.mxu0 %v780
  %1227 = vmatprep.subr.bf16.mxu0 0
  %1228 = vmatpush1.bf16.msra.mxu0 %v775
  %1229 = vmatprep.subr.bf16.mxu0 0
  %1230 = vmatpush2.bf16.msra.mxu0 0
  %1231 = vmatprep.subr.bf16.mxu0 0
  %1232 = vmatpush2.bf16.msra.mxu0 0
  %1233 = vmatprep.subr.bf16.mxu0 0
  %1234 = vmatpush2.bf16.msra.mxu0 %v1007
  %1235 = vmatprep.subr.bf16.mxu0 0
  %1236 = vmatpush2.bf16.msra.mxu0 %v835
  %1237 = vmatprep.subr.bf16.mxu0 0
  %1238 = vmatpush2.bf16.msra.mxu0 %v830
  %1239 = vmatprep.subr.bf16.mxu0 0
  %1240 = vmatpush2.bf16.msra.mxu0 %v825
  %1241 = vmatprep.subr.bf16.mxu0 0
  %1242 = vmatpush2.bf16.msra.mxu0 %v820
  %1243 = vmatprep.subr.bf16.mxu0 0
  %1244 = vmatpush2.bf16.msra.mxu0 %v815
  %1245 = vmatprep.mubr.bf16.mxu0 %v988
  %1246 = vmatmul.mubr.bf16.gmra.mxu0 %v206
  %v1247 = vpop.f32.mrf.mxu0
  %v1248 = vadd.f32 %v1208, %v1247
  %v1249 = vpop.f32.mrf.mxu0
  %v1250 = vpop.f32.mrf.mxu0
  %v1251 = vpop.f32.mrf.mxu0
  %1252 = vdwg.mxu0
  %v1254 = vlaneseq
  %v1255 = vshrl.u32 %v1254, 7
  %v1256 = vsub.s32 0, %v1255
  %v1257 = vrot.slane %v15, %v1256
  %v1258 = vlaneseq
  %v1259 = vshrl.u32 %v1258, 7
  %v1260 = vsub.s32 1, %v1259
  %v1261 = vrot.slane %v15, %v1260
  %v1262 = vlaneseq
  %v1263 = vshrl.u32 %v1262, 7
  %v1264 = vsub.s32 2, %v1263
  %v1265 = vrot.slane %v15, %v1264
  %v1266 = vlaneseq
  %v1267 = vshrl.u32 %v1266, 7
  %v1268 = vsub.s32 3, %v1267
  %v1269 = vrot.slane %v15, %v1268
  %v1270 = vlaneseq
  %v1271 = vshrl.u32 %v1270, 7
  %v1272 = vsub.s32 4, %v1271
  %v1273 = vrot.slane %v15, %v1272
  %v1279 = vadd.f32 %v1257, %v1085
  %v1280 = vadd.f32 %v1261, %v1087
  %v1281 = vadd.f32 %v1265, %v1167
  %v1282 = vadd.f32 %v1269, %v1169
  %v1283 = vadd.f32 %v1273, %v1248
  %1284 = vst [vmem:[%s3] sm:$0xff] %v1279
  %1285 = vst [vmem:[%s3 + $0x8] sm:$0xff] %v1280
  %1286 = vst [vmem:[%s3 + $0x10] sm:$0xff] %v1281
  %1287 = vst [vmem:[%s3 + $0x18] sm:$0xff] %v1282
  %1288 = vst [vmem:[%s3 + $0x20] sm:$0xff] %v1283
  // Predicated region
  $region14: #{lbs_pallas.2} parent=0 // pred_check
    _
  $region15: #{lbs_pallas.2} parent=0 // pred_check_branch
    %1290 = sbr.rel (0) target = $region17
  $region16: #{lbs_pallas.2} parent=0 // pred_region
    _
  $region17: #{lbs_pallas.2} parent=0 // pred_fallthru
    _
  // Predicated region
  $region18: #{lbs_pallas.2} parent=0 // pred_check
    _
  $region19: #{lbs_pallas.2} parent=0 // pred_check_branch
    %1292 = sbr.rel (0) target = $region21
  $region20: #{lbs_pallas.2} parent=0 // pred_region
    _
  $region21: #{lbs_pallas.2} parent=0 // pred_fallthru
    _

// kernel: lbs_pallas.3
$region0: #{lbs_pallas.3}
  #allocation0 [shape = 'u32[]', space=smem, size = 0x4, offset = 0x4, fixed_abs, tag = 'smem constant byte address 0x4 - core index']
  #allocation1 [shape = 'u32[144,128]{1,0:T(1,128)}', space=vmem, size = 0x12000, scoped, tag = 'internal scratch']
  %s0 = inlined_call_operand.vmem [shape: f32[96,52], index: 0, kind: input, shape index: {}]
  %s1 = inlined_call_operand.vmem [shape: f32[52,128], index: 1, kind: input, shape index: {}]
  %s2 = inlined_call_operand.vmem [shape: f32[8,640], index: 2, kind: input, shape index: {}, may-alias: {2,3,4}]
  %s3 = inlined_call_operand.vmem [shape: f32[8,640], index: 3, kind: input, shape index: {}, may-alias: {2,3,4}]
  %s4 = inlined_call_operand.vmem [shape: f32[8,640], index: 4, kind: input, shape index: {}, may-alias: {2,3,4}]
  %s5 = inlined_call_operand.hbm [shape: f32[3,8,128], index: 5, kind: output, shape index: {}]
  %s6 = sld [smem:[#allocation0]]
  $region30: #{lbs_pallas.3} parent=0
    _
  %s8 = ssub.s32 1, %s6
  %s9 = scalar_select 0, %s8, %s6
  $region1: #{lbs_pallas.3} parent=0
    #allocation2 [shape = 'u8[12288]{0}', space=vmem, size = 0x3000, scoped, tag = 'output window, operand 0, single buffered']
    #allocation3 [shape = 's32[1]{0}', space=sflag, size = 0x4, scoped, tag = 'scoped memory for lbs_pallas.3']
    %10 = vsyncpa [#allocation3], 0
    // Predicated region
    $region2: #{lbs_pallas.3} parent=1 // pred_check
      _
    $region3: #{lbs_pallas.3} parent=1 // pred_check_branch
      %12 = sbr.rel (0) target = $region5
    $region4: #{lbs_pallas.3} parent=1 // pred_region
      _
    $region5: #{lbs_pallas.3} parent=1 // pred_fallthru
      _
    // Predicated region
    $region6: #{lbs_pallas.3} parent=1 // pred_check
      _
    $region7: #{lbs_pallas.3} parent=1 // pred_check_branch
      %14 = sbr.rel (0) target = $region9
    $region8: #{lbs_pallas.3} parent=1 // pred_region
      _
    $region9: #{lbs_pallas.3} parent=1 // pred_fallthru
      _
    // Predicated region
    $region10: #{lbs_pallas.3} parent=1 // pred_check
      _
    $region11: #{lbs_pallas.3} parent=1 // pred_check_branch
      %16 = sbr.rel (0) target = $region13
    $region12: #{lbs_pallas.3} parent=1 // pred_region
      _
    $region13: #{lbs_pallas.3} parent=1 // pred_fallthru
      _
    // Predicated region
    $region14: #{lbs_pallas.3} parent=1 // pred_check
      _
    $region15: #{lbs_pallas.3} parent=1 // pred_check_branch
      %18 = sbr.rel (0) target = $region17
    $region16: #{lbs_pallas.3} parent=1 // pred_region
      %s19 = sadd.s32 0, 1
      %p20 = scmp.lt.s32.totalorder %s19, 4
      %s21 = scalar_select %p20, %s19, 4
      %s22 = smul.addr %s21, 8
      %s23 = scalar_lea.vmem %s3, %s22
      %s24 = sadd.s32 0, 1
    $region17: #{lbs_pallas.3} parent=1 // pred_fallthru
      _
    // Predicated region
    $region18: #{lbs_pallas.3} parent=1 // pred_check
      _
    $region19: #{lbs_pallas.3} parent=1 // pred_check_branch
      %26 = sbr.rel (0) target = $region21
    $region20: #{lbs_pallas.3} parent=1 // pred_region
      %s27 = sadd.s32 0, 2
      %p28 = scmp.lt.s32.totalorder %s27, 4
      %s29 = scalar_select %p28, %s27, 4
      %s30 = smul.addr %s29, 8
      %s31 = scalar_lea.vmem %s4, %s30
      %s32 = sadd.s32 0, 2
    $region21: #{lbs_pallas.3} parent=1 // pred_fallthru
      _
    %s33 = sadd.s32 0, 1
    %p34 = scmp.lt.s32.totalorder %s33, 4
    %s35 = scalar_select %p34, %s33, 4
    %s36 = smul.addr %s35, 8
    %s37 = scalar_lea.vmem %s3, %s36
    %s38 = sadd.s32 0, 2
    %p39 = scmp.lt.s32.totalorder %s38, 4
    %s40 = scalar_select %p39, %s38, 4
    %s41 = smul.addr %s40, 8
    %s42 = scalar_lea.vmem %s4, %s41
    %s43 = sadd.s32 0, 1
    %p44 = scmp.lt.s32.totalorder %s43, 4
    %s45 = scalar_select %p44, %s43, 4
    %s46 = smul.addr %s45, 8
    %s47 = scalar_lea.vmem %s3, %s46
    %s48 = sadd.s32 0, 1
    %s49 = sadd.s32 0, 2
    %p50 = scmp.lt.s32.totalorder %s49, 4
    %s51 = scalar_select %p50, %s49, 4
    %s52 = smul.addr %s51, 8
    %s53 = scalar_lea.vmem %s4, %s52
    %s54 = sadd.s32 0, 2
    %v55 = vld [vmem:[%s0] sm:$0xff]
    %v56 = vld [vmem:[%s0 + $0x8] sm:$0xff]
    %v57 = vld [vmem:[%s0 + $0x10] sm:$0xff]
    %v58 = vld [vmem:[%s0 + $0x18] sm:$0xff]
    %v59 = vld [vmem:[%s0 + $0x20] sm:$0xff]
    %v60 = vld [vmem:[%s0 + $0x28] sm:$0xff]
    %v61 = vld [vmem:[%s0 + $0x30] sm:$0xff]
    %v62 = vld [vmem:[%s0 + $0x38] sm:$0xff]
    %v63 = vld [vmem:[%s0 + $0x40] sm:$0xff]
    %v64 = vld [vmem:[%s0 + $0x48] sm:$0xff]
    %v65 = vld [vmem:[%s0 + $0x50] sm:$0xff]
    %v66 = vld [vmem:[%s0 + $0x58] sm:$0xff]
    %v67 = vld [vmem:[%s1] sm:$0xff]
    %v68 = vld [vmem:[%s1 + $0x8] sm:$0xff]
    %v69 = vld [vmem:[%s1 + $0x10] sm:$0xff]
    %v70 = vld [vmem:[%s1 + $0x18] sm:$0xff]
    %v71 = vld [vmem:[%s1 + $0x20] sm:$0xff]
    %v72 = vld [vmem:[%s1 + $0x28] sm:$0xff]
    %v73 = vld [vmem:[%s1 + $0x30] sm:$0xf]
    %vm74 = vcmask 424960
    %v76 = vsel %vm74, %v55, 0
    %v79 = vsel %vm74, %v56, 0
    %v82 = vsel %vm74, %v57, 0
    %v85 = vsel %vm74, %v58, 0
    %v88 = vsel %vm74, %v59, 0
    %v91 = vsel %vm74, %v60, 0
    %v94 = vsel %vm74, %v61, 0
    %v97 = vsel %vm74, %v62, 0
    %v100 = vsel %vm74, %v63, 0
    %v103 = vsel %vm74, %v64, 0
    %v106 = vsel %vm74, %v65, 0
    %v109 = vsel %vm74, %v66, 0
    %vm111 = vcmask 1043456
    %v113 = vsel %vm111, %v73, 0
    %115 = vmatprep.subr.mxu0 0.0
    %116 = vmatpush1.msra.mxu0 0.0
    %117 = vmatprep.subr.mxu0 0.0
    %118 = vmatpush1.msra.mxu0 0.0
    %119 = vmatprep.subr.mxu0 0.0
    %120 = vmatpush1.msra.mxu0 0.0
    %121 = vmatprep.subr.mxu0 0.0
    %122 = vmatpush1.msra.mxu0 0.0
    %123 = vmatprep.subr.mxu0 0.0
    %124 = vmatpush1.msra.mxu0 0.0
    %125 = vmatprep.subr.mxu0 0.0
    %126 = vmatpush1.msra.mxu0 0.0
    %127 = vmatprep.subr.mxu0 0.0
    %128 = vmatpush1.msra.mxu0 0.0
    %129 = vmatprep.subr.mxu0 0.0
    %130 = vmatpush1.msra.mxu0 0.0
    %131 = vmatprep.subr.mxu0 0.0
    %132 = vmatpush1.msra.mxu0 0.0
    %133 = vmatprep.subr.mxu0 0.0
    %134 = vmatpush1.msra.mxu0 %v113
    %135 = vmatprep.subr.mxu0 0.0
    %136 = vmatpush1.msra.mxu0 %v72
    %137 = vmatprep.subr.mxu0 0.0
    %138 = vmatpush1.msra.mxu0 %v71
    %139 = vmatprep.subr.mxu0 0.0
    %140 = vmatpush1.msra.mxu0 %v70
    %141 = vmatprep.subr.mxu0 0.0
    %142 = vmatpush1.msra.mxu0 %v69
    %143 = vmatprep.subr.mxu0 0.0
    %144 = vmatpush1.msra.mxu0 %v68
    %145 = vmatprep.subr.mxu0 0.0
    %146 = vmatpush1.msra.mxu0 %v67
    %147 = vmatprep.subr.mxu0 0.0
    %148 = vmatpush2.msra.mxu0 0.0
    %149 = vmatprep.subr.mxu0 0.0
    %150 = vmatpush2.msra.mxu0 0.0
    %151 = vmatprep.subr.mxu0 0.0
    %152 = vmatpush2.msra.mxu0 0.0
    %153 = vmatprep.subr.mxu0 0.0
    %154 = vmatpush2.msra.mxu0 0.0
    %155 = vmatprep.subr.mxu0 0.0
    %156 = vmatpush2.msra.mxu0 0.0
    %157 = vmatprep.subr.mxu0 0.0
    %158 = vmatpush2.msra.mxu0 0.0
    %159 = vmatprep.subr.mxu0 0.0
    %160 = vmatpush2.msra.mxu0 0.0
    %161 = vmatprep.subr.mxu0 0.0
    %162 = vmatpush2.msra.mxu0 0.0
    %163 = vmatprep.subr.mxu0 0.0
    %164 = vmatpush2.msra.mxu0 0.0
    %165 = vmatprep.subr.mxu0 0.0
    %166 = vmatpush2.msra.mxu0 0.0
    %167 = vmatprep.subr.mxu0 0.0
    %168 = vmatpush2.msra.mxu0 0.0
    %169 = vmatprep.subr.mxu0 0.0
    %170 = vmatpush2.msra.mxu0 0.0
    %171 = vmatprep.subr.mxu0 0.0
    %172 = vmatpush2.msra.mxu0 0.0
    %173 = vmatprep.subr.mxu0 0.0
    %174 = vmatpush2.msra.mxu0 0.0
    %175 = vmatprep.subr.mxu0 0.0
    %176 = vmatpush2.msra.mxu0 0.0
    %177 = vmatprep.subr.mxu0 0.0
    %178 = vmatpush2.msra.mxu0 0.0
    %179 = vmatprep.mubr.f32.mxu0 0.0
    %180 = vmatmul.mubr.f32.gmra.mxu0 %v76
    %v181 = vpop.f32.mrf.mxu0
    %v182 = vadd.f32 0.0, %v181
    %v183 = vpop.f32.mrf.mxu0
    %184 = vmatprep.mubr.f32.mxu0 0.0
    %185 = vmatmul.mubr.f32.gmra.mxu0 %v79
    %v186 = vpop.f32.mrf.mxu0
    %v187 = vadd.f32 0.0, %v186
    %v188 = vpop.f32.mrf.mxu0
    %189 = vmatprep.mubr.f32.mxu0 0.0
    %190 = vmatmul.mubr.f32.gmra.mxu0 %v82
    %v191 = vpop.f32.mrf.mxu0
    %v192 = vadd.f32 0.0, %v191
    %v193 = vpop.f32.mrf.mxu0
    %194 = vmatprep.mubr.f32.mxu0 0.0
    %195 = vmatmul.mubr.f32.gmra.mxu0 %v85
    %v196 = vpop.f32.mrf.mxu0
    %v197 = vadd.f32 0.0, %v196
    %v198 = vpop.f32.mrf.mxu0
    %199 = vmatprep.mubr.f32.mxu0 0.0
    %200 = vmatmul.mubr.f32.gmra.mxu0 %v88
    %v201 = vpop.f32.mrf.mxu0
    %v202 = vadd.f32 0.0, %v201
    %v203 = vpop.f32.mrf.mxu0
    %204 = vmatprep.mubr.f32.mxu0 0.0
    %205 = vmatmul.mubr.f32.gmra.mxu0 %v91
    %v206 = vpop.f32.mrf.mxu0
    %v207 = vadd.f32 0.0, %v206
    %v208 = vpop.f32.mrf.mxu0
    %209 = vmatprep.mubr.f32.mxu0 0.0
    %210 = vmatmul.mubr.f32.gmra.mxu0 %v94
    %v211 = vpop.f32.mrf.mxu0
    %v212 = vadd.f32 0.0, %v211
    %v213 = vpop.f32.mrf.mxu0
    %214 = vmatprep.mubr.f32.mxu0 0.0
    %215 = vmatmul.mubr.f32.gmra.mxu0 %v97
    %v216 = vpop.f32.mrf.mxu0
    %v217 = vadd.f32 0.0, %v216
    %v218 = vpop.f32.mrf.mxu0
    %219 = vmatprep.mubr.f32.mxu0 0.0
    %220 = vmatmul.mubr.f32.gmra.mxu0 %v100
    %v221 = vpop.f32.mrf.mxu0
    %v222 = vadd.f32 0.0, %v221
    %v223 = vpop.f32.mrf.mxu0
    %224 = vmatprep.mubr.f32.mxu0 0.0
    %225 = vmatmul.mubr.f32.gmra.mxu0 %v103
    %v226 = vpop.f32.mrf.mxu0
    %v227 = vadd.f32 0.0, %v226
    %v228 = vpop.f32.mrf.mxu0
    %229 = vmatprep.mubr.f32.mxu0 0.0
    %230 = vmatmul.mubr.f32.gmra.mxu0 %v106
    %v231 = vpop.f32.mrf.mxu0
    %v232 = vadd.f32 0.0, %v231
    %v233 = vpop.f32.mrf.mxu0
    %234 = vmatprep.mubr.f32.mxu0 0.0
    %235 = vmatmul.mubr.f32.gmra.mxu0 %v109
    %v236 = vpop.f32.mrf.mxu0
    %v237 = vadd.f32 0.0, %v236
    %v238 = vpop.f32.mrf.mxu0
    %239 = vdwg.mxu0
    %v240 = vld [vmem:[%s2] sm:$0xff]
    %v241 = vld [vmem:[%s47] sm:$0xff]
    %v242 = vld [vmem:[%s53] sm:$0xff]
    %v243 = vmul.f32 %v182, %v240
    %v244 = vmul.f32 %v187, %v241
    %v245 = vadd.f32 %v243, %v244
    %v246 = vmul.f32 %v192, %v242
    %v247 = vadd.f32 %v245, %v246
    %v248 = vadd.f32 %v247, %v197
    %249 = vst [vmem:[#allocation2] sm:$0xff] %v248
    %v250 = vmul.f32 %v202, %v240
    %v251 = vmul.f32 %v207, %v241
    %v252 = vadd.f32 %v250, %v251
    %v253 = vmul.f32 %v212, %v242
    %v254 = vadd.f32 %v252, %v253
    %v255 = vadd.f32 %v254, %v217
    %s256 = scalar_lea.vmem [#allocation2], 8
    %257 = vst [vmem:[%s256] sm:$0xff] %v255
    %v258 = vmul.f32 %v222, %v240
    %v259 = vmul.f32 %v227, %v241
    %v260 = vadd.f32 %v258, %v259
    %v261 = vmul.f32 %v232, %v242
    %v262 = vadd.f32 %v260, %v261
    %v263 = vadd.f32 %v262, %v237
    %s264 = scalar_lea.vmem [#allocation2], 16
    %265 = vst [vmem:[%s264] sm:$0xff] %v263
    // Predicated region
    $region22: #{lbs_pallas.3} parent=1 // pred_check
      _
    $region23: #{lbs_pallas.3} parent=1 // pred_check_branch
      %267 = sbr.rel (0) target = $region25
    $region24: #{lbs_pallas.3} parent=1 // pred_region
      %s269 = ssub.s32 384, 384
      %270 = vsyncadd [#allocation3], %s269
      %s271 = sshll.u32 [#allocation2], 4
      %s272 = int_to_ptr.vmem [resolvable:$true] %s271
      %277 = dma.vmem_to_hbm [thread:$0]  %s272, 384, %s5, [#allocation3], 128, 128, 8
    $region25: #{lbs_pallas.3} parent=1 // pred_fallthru
      _
    // Predicated region
    $region26: #{lbs_pallas.3} parent=1 // pred_check
      _
    $region27: #{lbs_pallas.3} parent=1 // pred_check_branch
      %279 = sbr.rel (0) target = $region29
    $region28: #{lbs_pallas.3} parent=1 // pred_region
      %280 = dma.done [#allocation3], 384
    $region29: #{lbs_pallas.3} parent=1 // pred_fallthru
      _
    %281 = vsyncpa [#allocation3], 1

</llo_original>
